<compile_context>
chip_gen: v7x
topology: tpu7x:2x2x1
jax: 0.10.0
libtpu: 0.0.40
codegen_flags: <defaults>
</compile_context>

<pallas_src>
import functools

import jax
import jax.numpy as jnp
from jax.experimental import pallas as pl
from jax.experimental.pallas import tpu as pltpu

NEG_SLOPE = 0.01   # PyTorch nn.LeakyReLU default
BN_EPS = 1e-5      # PyTorch BatchNorm1d default


def _leaky_relu(x):
    return jnp.where(x >= 0, x, NEG_SLOPE * x)


def _sigmoid(x):
    # Numerically stable sigmoid via tanh (EUP op; no exp overflow for large |x|).
    return 0.5 * (jnp.tanh(0.5 * x) + 1.0)


# --------------------------------------------------------------------------- #
# Kernel
# --------------------------------------------------------------------------- #
def clinnet_kernel(lr_ref, dem_ref, w1_ref, w2_ref, w4_ref, w5_ref, w36_ref,
                   vec512_ref, vecs_ref, cl_ref, out_ref):
    B = dem_ref.shape[0]
    H = w2_ref.shape[0]            # 512

    # Packed small parameters (static slices of the two slabs).
    b1   = vec512_ref[0:1, :]      # D1 bias (BN1+BN2 folded)
    b2   = vec512_ref[1:2, :]      # D2 bias (BN3 folded)
    bn4s = vec512_ref[2:3, :]      # BN4 scale (cannot be folded: LR in between)
    bn4t = vec512_ref[3:4, :]      # BN4 shift
    b4   = vec512_ref[4:5, :]      # D4 bias (BN6+BN7 folded)
    b5   = vec512_ref[5:6, :]      # D5 bias (BN8 folded)
    b3   = vecs_ref[0:1, :]        # D3 bias (BN5 folded), cols 8:11 = 0
    b6   = vecs_ref[1:2, :]        # D6 bias (BN9 folded), cols 0:8 = 0
    wout = vecs_ref[2:3, :]        # Out weight as a (1, 11) row
    bout = vecs_ref[3:4, 0:1]      # Out bias (1, 1)

    # ---- shared siamese branch: left & right stacked -> ONE pass ---------- #
    h = jnp.dot(lr_ref[...], w1_ref[...], preferred_element_type=jnp.float32) + b1
    h = _leaky_relu(h)
    # Drop -> identity (eval). 512x512 weight is bf16; accumulate in f32.
    h = jnp.dot(h.astype(jnp.bfloat16), w2_ref[...],
                preferred_element_type=jnp.float32) + b2
    h = _leaky_relu(h)

    diff = jnp.abs(h[0:B, :] - h[B:2 * B, :])

    # BN4 + LR3 + D3 (BN5 folded, padded to 11 output cols) + LR4.
    x = _leaky_relu(diff * bn4s + bn4t)
    x = jnp.dot(x, w36_ref[0:H, :], preferred_element_type=jnp.float32) + b3
    x = _leaky_relu(x)                      # (B, 11): columns 8:11 are exactly 0

    # ---- demographics head ------------------------------------------------ #
    d = jnp.dot(dem_ref[...], w4_ref[...], preferred_element_type=jnp.float32) + b4
    d = _leaky_relu(d)
    d = jnp.dot(d.astype(jnp.bfloat16), w5_ref[...],
                preferred_element_type=jnp.float32) + b5
    d = _leaky_relu(d)
    d = jnp.dot(d, w36_ref[H:2 * H, :], preferred_element_type=jnp.float32) + b6
    d = _leaky_relu(d)                      # (B, 11): columns 0:8 are exactly 0

    # torch.cat((x, d), 1) realized as a pure elementwise add of the padded halves.
    cl = x + d
    cl_ref[...] = cl

    # Drop -> identity; Out = Linear(11, 1) as VPU multiply + lane reduce; Sigmoid.
    logit = jnp.sum(cl * wout, axis=-1, keepdims=True) + bout
    out_ref[...] = _sigmoid(logit)


# --------------------------------------------------------------------------- #
# Wrapper
# --------------------------------------------------------------------------- #
def clinnet_forward(fused, left_cl, right_cl, dem):
    """Pallas-backed ClinNet.forward. Returns (cl, out) just like the module."""
    B = left_cl.shape[0]
    lr_in = jnp.concatenate([left_cl, right_cl], axis=0)   # (2B, 8) stacked branch input
    vmem = pl.BlockSpec(memory_space=pltpu.MemorySpace.VMEM)
    args = (lr_in, dem, fused["w1"], fused["w2"], fused["w4"], fused["w5"],
            fused["w36"], fused["vec512"], fused["vecs"])
    cl, out = pl.pallas_call(
        clinnet_kernel,
        out_shape=(
            jax.ShapeDtypeStruct((B, 11), jnp.float32),
            jax.ShapeDtypeStruct((B, 1), jnp.float32),
        ),
        in_specs=[vmem] * len(args),
        out_specs=(vmem, vmem),
    )(*args)
    return cl, out


# --------------------------------------------------------------------------- #
# Parameter setup: raw PyTorch-shaped params + eval-mode BN folding
# --------------------------------------------------------------------------- #
def init_raw_params(key):
    """Deterministic synthetic parameters (shapes from ClinNet.__init__)."""
    def bn(k, c):
        k1, k2, k3, k4 = jax.random.split(k, 4)
        return dict(
            gamma=1.0 + 0.1 * jax.random.normal(k1, (1, c), jnp.float32),
            beta=0.1 * jax.random.normal(k2, (1, c), jnp.float32),
            mean=0.1 * jax.random.normal(k3, (1, c), jnp.float32),
            var=1.0 + 0.1 * jnp.abs(jax.random.normal(k4, (1, c), jnp.float32)),
        )

    def linear(k, fin, fout):
        k1, k2 = jax.random.split(k)
        bound = 1.0 / float(fin) ** 0.5
        w = jax.random.uniform(k1, (fin, fout), jnp.float32, -bound, bound)
        b = jax.random.uniform(k2, (1, fout), jnp.float32, -bound, bound)
        return w, b

    keys = jax.random.split(key, 16)
    p = {}
    p["bn1"] = bn(keys[0], 8)                       # BN1_cl
    p["w1"], p["b1"] = linear(keys[1], 8, 512)      # D1_cl
    p["bn2"] = bn(keys[2], 512)                     # BN2_cl
    p["w2"], p["b2"] = linear(keys[3], 512, 512)    # D2_cl
    p["bn3"] = bn(keys[4], 512)                     # BN3_cl
    p["bn4"] = bn(keys[5], 512)                     # BN4_cl
    p["w3"], p["b3"] = linear(keys[6], 512, 8)      # D3_cl
    p["bn5"] = bn(keys[7], 8)                       # BN5_cl
    p["bn6"] = bn(keys[8], 3)                       # BN6_cl
    p["w4"], p["b4"] = linear(keys[9], 3, 512)      # D4_cl
    p["bn7"] = bn(keys[10], 512)                    # BN7_cl
    p["w5"], p["b5"] = linear(keys[11], 512, 512)   # D5_cl
    p["bn8"] = bn(keys[12], 512)                    # BN8_cl
    p["w6"], p["b6"] = linear(keys[13], 512, 3)     # D6_cl
    p["bn9"] = bn(keys[14], 3)                      # BN9_cl
    p["wout"], p["bout"] = linear(keys[15], 11, 1)  # Out
    return p


def _bn_affine(bn):
    s = bn["gamma"] * jax.lax.rsqrt(bn["var"] + BN_EPS)
    t = bn["beta"] - bn["mean"] * s
    return s, t


def fold_params(p):
    """Fold eval-mode BN affines into the adjacent Linears and pack small params."""
    s1, t1 = _bn_affine(p["bn1"]); s2, t2 = _bn_affine(p["bn2"])
    s3, t3 = _bn_affine(p["bn3"]); s4, t4 = _bn_affine(p["bn4"])
    s5, t5 = _bn_affine(p["bn5"]); s6, t6 = _bn_affine(p["bn6"])
    s7, t7 = _bn_affine(p["bn7"]); s8, t8 = _bn_affine(p["bn8"])
    s9, t9 = _bn_affine(p["bn9"])

    # BN1 (input side) and BN2 (output side) folded into D1.
    w1f = (s1.T * p["w1"]) * s2
    b1f = (t1 @ p["w1"] + p["b1"]) * s2 + t2
    # BN3 folded into D2; 512x512 weight stored bf16 (f32 accumulation in-kernel).
    w2f = (p["w2"] * s3).astype(jnp.bfloat16)
    b2f = p["b2"] * s3 + t3
    # BN5 folded into D3; zero-pad outputs 8 -> 11 columns (cols 8:11 stay 0 thru LR).
    w3f = p["w3"] * s5
    b3f = p["b3"] * s5 + t5
    w3p = jnp.concatenate([w3f, jnp.zeros((512, 3), jnp.float32)], axis=1)
    b3p = jnp.concatenate([b3f, jnp.zeros((1, 3), jnp.float32)], axis=1)
    # BN6 (input side) and BN7 (output side) folded into D4.
    w4f = (s6.T * p["w4"]) * s7
    b4f = (t6 @ p["w4"] + p["b4"]) * s7 + t7
    # BN8 folded into D5 (bf16 weight).
    w5f = (p["w5"] * s8).astype(jnp.bfloat16)
    b5f = p["b5"] * s8 + t8
    # BN9 folded into D6; placed into columns 8:11 of an 11-wide output.
    w6f = p["w6"] * s9
    b6f = p["b6"] * s9 + t9
    w6p = jnp.concatenate([jnp.zeros((512, 8), jnp.float32), w6f], axis=1)
    b6p = jnp.concatenate([jnp.zeros((1, 8), jnp.float32), b6f], axis=1)

    vec512 = jnp.concatenate([b1f, b2f, s4, t4, b4f, b5f], axis=0)         # (6, 512)
    wout_row = p["wout"].T                                                 # (1, 11)
    bout_row = jnp.concatenate([p["bout"], jnp.zeros((1, 10), jnp.float32)], axis=1)
    vecs = jnp.concatenate([b3p, b6p, wout_row, bout_row], axis=0)         # (4, 11)

    return dict(
        w1=w1f, w2=w2f, w4=w4f, w5=w5f,
        w36=jnp.concatenate([w3p, w6p], axis=0),                           # (1024, 11)
        vec512=vec512, vecs=vecs,
    )


# --------------------------------------------------------------------------- #
# Pure-JAX references
# --------------------------------------------------------------------------- #
def clinnet_reference_fused(fused, left_cl, right_cl, dem):
    """Same math as the kernel (folded params, bf16 512x512 matmuls)."""
    H = 512
    B = left_cl.shape[0]
    v = fused["vec512"]
    b1, b2, bn4s, bn4t, b4, b5 = (v[i:i + 1] for i in range(6))
    s = fused["vecs"]
    b3, b6, wout = s[0:1], s[1:2], s[2:3]
    bout = s[3:4, 0:1]

    lr_in = jnp.concatenate([left_cl, right_cl], axis=0)
    h = _leaky_relu(lr_in @ fused["w1"] + b1)
    h = _leaky_relu(jnp.dot(h.astype(jnp.bfloat16), fused["w2"],
                            preferred_element_type=jnp.float32) + b2)
    diff = jnp.abs(h[:B] - h[B:])
    x = _leaky_relu(diff * bn4s + bn4t)
    x = _leaky_relu(x @ fused["w36"][:H] + b3)

    d = _leaky_relu(dem @ fused["w4"] + b4)
    d = _leaky_relu(jnp.dot(d.astype(jnp.bfloat16), fused["w5"],
                            preferred_element_type=jnp.float32) + b5)
    d = _leaky_relu(d @ fused["w36"][H:] + b6)

    cl = x + d
    out = _sigmoid(jnp.sum(cl * wout, axis=-1, keepdims=True) + bout)
    return cl, out


def clinnet_reference_original(p, left_cl, right_cl, dem):
    """Original (unfused, full f32) eval-mode semantics of the PyTorch module."""
    lr = _leaky_relu

    def bnorm(x, bn):
        s, t = _bn_affine(bn)
        return x * s + t

    def branch(x):
        x = bnorm(x, p["bn1"]) @ p["w1"] + p["b1"]
        x = lr(bnorm(x, p["bn2"]))
        x = x @ p["w2"] + p["b2"]
        x = lr(bnorm(x, p["bn3"]))
        return x

    diff = jnp.abs(branch(left_cl) - branch(right_cl))
    x = lr(bnorm(diff, p["bn4"]))
    x = x @ p["w3"] + p["b3"]
    x = lr(bnorm(x, p["bn5"]))

    d = bnorm(dem, p["bn6"]) @ p["w4"] + p["b4"]
    d = lr(bnorm(d, p["bn7"]))
    d = d @ p["w5"] + p["b5"]
    d = lr(bnorm(d, p["bn8"]))
    d = d @ p["w6"] + p["b6"]
    d = lr(bnorm(d, p["bn9"]))

    cl = jnp.concatenate([x, d], axis=1)
    out = jax.nn.sigmoid(cl @ p["wout"] + p["bout"])
    return cl, out


# --------------------------------------------------------------------------- #
# Main
# --------------------------------------------------------------------------- #
if __name__ == "__main__":
    key = jax.random.PRNGKey(0)
    kp, kl, kr, kd = jax.random.split(key, 4)
    raw = init_raw_params(kp)
    fused = fold_params(raw)

    B = 8
    left_cl = jax.random.normal(kl, (B, 8), jnp.float32)
    right_cl = jax.random.normal(kr, (B, 8), jnp.float32)
    dem = jax.random.normal(kd, (B, 3), jnp.float32)

    fwd = jax.jit(functools.partial(clinnet_forward, fused))
    cl, out = fwd(left_cl, right_cl, dem)
    jax.block_until_ready((cl, out))

    cl_f, out_f = clinnet_reference_fused(fused, left_cl, right_cl, dem)
    cl_o, out_o = clinnet_reference_original(raw, left_cl, right_cl, dem)

    assert cl.shape == (B, 11) and out.shape == (B, 1)
    assert bool(jnp.all(jnp.isfinite(cl))) and bool(jnp.all(jnp.isfinite(out)))
    # Tight check: kernel vs. identical-math JAX reference (same folding, same bf16).
    assert jnp.allclose(cl, cl_f, atol=2e-3, rtol=2e-3)
    assert jnp.allclose(out, out_f, atol=2e-3, rtol=2e-3)
    # Fidelity check vs. original full-f32 module semantics (bf16 w2/w5 quantization).
    assert jnp.allclose(cl, cl_o, atol=1e-1, rtol=1e-1)
    assert jnp.allclose(out, out_o, atol=1e-1, rtol=1e-1)

    print("KERNEL_OK")
</pallas_src>

<mosaic_0001>
module attributes {stable_mosaic.version = 11 : i64} {
  func.func @clinnet_kernel(%arg0: memref<16x8xf32, #tpu.memory_space<vmem>>, %arg1: memref<8x3xf32, #tpu.memory_space<vmem>>, %arg2: memref<8x512xf32, #tpu.memory_space<vmem>>, %arg3: memref<512x512xbf16, #tpu.memory_space<vmem>>, %arg4: memref<3x512xf32, #tpu.memory_space<vmem>>, %arg5: memref<512x512xbf16, #tpu.memory_space<vmem>>, %arg6: memref<1024x11xf32, #tpu.memory_space<vmem>>, %arg7: memref<6x512xf32, #tpu.memory_space<vmem>>, %arg8: memref<4x11xf32, #tpu.memory_space<vmem>>, %arg9: memref<8x11xf32, #tpu.memory_space<vmem>>, %arg10: memref<8x1xf32, #tpu.memory_space<vmem>>) attributes {dimension_semantics = [], scalar_prefetch = 0 : i64, scratch_operands = 0 : i64, tpu.core_type = #tpu.core_type<tc>} {
    %c0 = arith.constant 0 : index
    %c0_0 = arith.constant 0 : index
    %0 = vector.load %arg7[%c0, %c0_0] : memref<6x512xf32, #tpu.memory_space<vmem>>, vector<1x512xf32>
    %c1 = arith.constant 1 : index
    %c0_1 = arith.constant 0 : index
    %1 = vector.load %arg7[%c1, %c0_1] : memref<6x512xf32, #tpu.memory_space<vmem>>, vector<1x512xf32>
    %c2 = arith.constant 2 : index
    %c0_2 = arith.constant 0 : index
    %2 = vector.load %arg7[%c2, %c0_2] : memref<6x512xf32, #tpu.memory_space<vmem>>, vector<1x512xf32>
    %c3 = arith.constant 3 : index
    %c0_3 = arith.constant 0 : index
    %3 = vector.load %arg7[%c3, %c0_3] : memref<6x512xf32, #tpu.memory_space<vmem>>, vector<1x512xf32>
    %c4 = arith.constant 4 : index
    %c0_4 = arith.constant 0 : index
    %4 = vector.load %arg7[%c4, %c0_4] : memref<6x512xf32, #tpu.memory_space<vmem>>, vector<1x512xf32>
    %c5 = arith.constant 5 : index
    %c0_5 = arith.constant 0 : index
    %5 = vector.load %arg7[%c5, %c0_5] : memref<6x512xf32, #tpu.memory_space<vmem>>, vector<1x512xf32>
    %c0_6 = arith.constant 0 : index
    %c0_7 = arith.constant 0 : index
    %6 = vector.load %arg8[%c0_6, %c0_7] : memref<4x11xf32, #tpu.memory_space<vmem>>, vector<1x11xf32>
    %c1_8 = arith.constant 1 : index
    %c0_9 = arith.constant 0 : index
    %7 = vector.load %arg8[%c1_8, %c0_9] : memref<4x11xf32, #tpu.memory_space<vmem>>, vector<1x11xf32>
    %c2_10 = arith.constant 2 : index
    %c0_11 = arith.constant 0 : index
    %8 = vector.load %arg8[%c2_10, %c0_11] : memref<4x11xf32, #tpu.memory_space<vmem>>, vector<1x11xf32>
    %c3_12 = arith.constant 3 : index
    %c0_13 = arith.constant 0 : index
    %9 = vector.load %arg8[%c3_12, %c0_13] : memref<4x11xf32, #tpu.memory_space<vmem>>, vector<1x1xf32>
    %c0_14 = arith.constant 0 : index
    %c0_15 = arith.constant 0 : index
    %10 = vector.load %arg0[%c0_14, %c0_15] : memref<16x8xf32, #tpu.memory_space<vmem>>, vector<16x8xf32>
    %c0_16 = arith.constant 0 : index
    %c0_17 = arith.constant 0 : index
    %11 = vector.load %arg2[%c0_16, %c0_17] : memref<8x512xf32, #tpu.memory_space<vmem>>, vector<8x512xf32>
    %cst = arith.constant dense<0.000000e+00> : vector<16x512xf32>
    %12 = tpu.matmul %10, %11, %cst {dimension_numbers = #tpu.dot_dimension_numbers<[1], [0], [0], [1], [0, 0, 1, 1], [], []>} : vector<16x8xf32>, vector<8x512xf32>, vector<16x512xf32> -> vector<16x512xf32>
    %13 = vector.broadcast %0 : vector<1x512xf32> to vector<16x512xf32>
    %14 = arith.addf %12, %13 : vector<16x512xf32>
    %cst_18 = arith.constant 0.000000e+00 : f32
    %15 = vector.broadcast %cst_18 : f32 to vector<16x512xf32>
    %16 = arith.cmpf oge, %14, %15 : vector<16x512xf32>
    %cst_19 = arith.constant 0.00999999977 : f32
    %17 = vector.broadcast %cst_19 : f32 to vector<16x512xf32>
    %18 = arith.mulf %17, %14 : vector<16x512xf32>
    %19 = arith.select %16, %14, %18 : vector<16x512xi1>, vector<16x512xf32>
    %20 = arith.truncf %19 : vector<16x512xf32> to vector<16x512xbf16>
    %c0_20 = arith.constant 0 : index
    %c0_21 = arith.constant 0 : index
    %21 = vector.load %arg3[%c0_20, %c0_21] : memref<512x512xbf16, #tpu.memory_space<vmem>>, vector<512x512xbf16>
    %cst_22 = arith.constant dense<0.000000e+00> : vector<16x512xf32>
    %22 = tpu.matmul %20, %21, %cst_22 {dimension_numbers = #tpu.dot_dimension_numbers<[1], [0], [0], [1], [0, 0, 1, 1], [], []>} : vector<16x512xbf16>, vector<512x512xbf16>, vector<16x512xf32> -> vector<16x512xf32>
    %23 = vector.broadcast %1 : vector<1x512xf32> to vector<16x512xf32>
    %24 = arith.addf %22, %23 : vector<16x512xf32>
    %cst_23 = arith.constant 0.000000e+00 : f32
    %25 = vector.broadcast %cst_23 : f32 to vector<16x512xf32>
    %26 = arith.cmpf oge, %24, %25 : vector<16x512xf32>
    %cst_24 = arith.constant 0.00999999977 : f32
    %27 = vector.broadcast %cst_24 : f32 to vector<16x512xf32>
    %28 = arith.mulf %27, %24 : vector<16x512xf32>
    %29 = arith.select %26, %24, %28 : vector<16x512xi1>, vector<16x512xf32>
    %30 = vector.extract_strided_slice %29 {offsets = [0, 0], sizes = [8, 512], strides = [1, 1]} : vector<16x512xf32> to vector<8x512xf32>
    %31 = vector.extract_strided_slice %29 {offsets = [8, 0], sizes = [8, 512], strides = [1, 1]} : vector<16x512xf32> to vector<8x512xf32>
    %32 = arith.subf %30, %31 : vector<8x512xf32>
    %33 = math.absf %32 : vector<8x512xf32>
    %34 = vector.broadcast %2 : vector<1x512xf32> to vector<8x512xf32>
    %35 = arith.mulf %33, %34 : vector<8x512xf32>
    %36 = vector.broadcast %3 : vector<1x512xf32> to vector<8x512xf32>
    %37 = arith.addf %35, %36 : vector<8x512xf32>
    %cst_25 = arith.constant 0.000000e+00 : f32
    %38 = vector.broadcast %cst_25 : f32 to vector<8x512xf32>
    %39 = arith.cmpf oge, %37, %38 : vector<8x512xf32>
    %cst_26 = arith.constant 0.00999999977 : f32
    %40 = vector.broadcast %cst_26 : f32 to vector<8x512xf32>
    %41 = arith.mulf %40, %37 : vector<8x512xf32>
    %42 = arith.select %39, %37, %41 : vector<8x512xi1>, vector<8x512xf32>
    %c0_27 = arith.constant 0 : index
    %c0_28 = arith.constant 0 : index
    %43 = vector.load %arg6[%c0_27, %c0_28] : memref<1024x11xf32, #tpu.memory_space<vmem>>, vector<512x11xf32>
    %cst_29 = arith.constant dense<0.000000e+00> : vector<8x11xf32>
    %44 = tpu.matmul %42, %43, %cst_29 {dimension_numbers = #tpu.dot_dimension_numbers<[1], [0], [0], [1], [0, 0, 1, 1], [], []>} : vector<8x512xf32>, vector<512x11xf32>, vector<8x11xf32> -> vector<8x11xf32>
    %45 = vector.broadcast %6 : vector<1x11xf32> to vector<8x11xf32>
    %46 = arith.addf %44, %45 : vector<8x11xf32>
    %cst_30 = arith.constant 0.000000e+00 : f32
    %47 = vector.broadcast %cst_30 : f32 to vector<8x11xf32>
    %48 = arith.cmpf oge, %46, %47 : vector<8x11xf32>
    %cst_31 = arith.constant 0.00999999977 : f32
    %49 = vector.broadcast %cst_31 : f32 to vector<8x11xf32>
    %50 = arith.mulf %49, %46 : vector<8x11xf32>
    %51 = arith.select %48, %46, %50 : vector<8x11xi1>, vector<8x11xf32>
    %c0_32 = arith.constant 0 : index
    %c0_33 = arith.constant 0 : index
    %52 = vector.load %arg1[%c0_32, %c0_33] : memref<8x3xf32, #tpu.memory_space<vmem>>, vector<8x3xf32>
    %c0_34 = arith.constant 0 : index
    %c0_35 = arith.constant 0 : index
    %53 = vector.load %arg4[%c0_34, %c0_35] : memref<3x512xf32, #tpu.memory_space<vmem>>, vector<3x512xf32>
    %cst_36 = arith.constant dense<0.000000e+00> : vector<8x512xf32>
    %54 = tpu.matmul %52, %53, %cst_36 {dimension_numbers = #tpu.dot_dimension_numbers<[1], [0], [0], [1], [0, 0, 1, 1], [], []>} : vector<8x3xf32>, vector<3x512xf32>, vector<8x512xf32> -> vector<8x512xf32>
    %55 = vector.broadcast %4 : vector<1x512xf32> to vector<8x512xf32>
    %56 = arith.addf %54, %55 : vector<8x512xf32>
    %cst_37 = arith.constant 0.000000e+00 : f32
    %57 = vector.broadcast %cst_37 : f32 to vector<8x512xf32>
    %58 = arith.cmpf oge, %56, %57 : vector<8x512xf32>
    %cst_38 = arith.constant 0.00999999977 : f32
    %59 = vector.broadcast %cst_38 : f32 to vector<8x512xf32>
    %60 = arith.mulf %59, %56 : vector<8x512xf32>
    %61 = arith.select %58, %56, %60 : vector<8x512xi1>, vector<8x512xf32>
    %62 = arith.truncf %61 : vector<8x512xf32> to vector<8x512xbf16>
    %c0_39 = arith.constant 0 : index
    %c0_40 = arith.constant 0 : index
    %63 = vector.load %arg5[%c0_39, %c0_40] : memref<512x512xbf16, #tpu.memory_space<vmem>>, vector<512x512xbf16>
    %cst_41 = arith.constant dense<0.000000e+00> : vector<8x512xf32>
    %64 = tpu.matmul %62, %63, %cst_41 {dimension_numbers = #tpu.dot_dimension_numbers<[1], [0], [0], [1], [0, 0, 1, 1], [], []>} : vector<8x512xbf16>, vector<512x512xbf16>, vector<8x512xf32> -> vector<8x512xf32>
    %65 = vector.broadcast %5 : vector<1x512xf32> to vector<8x512xf32>
    %66 = arith.addf %64, %65 : vector<8x512xf32>
    %cst_42 = arith.constant 0.000000e+00 : f32
    %67 = vector.broadcast %cst_42 : f32 to vector<8x512xf32>
    %68 = arith.cmpf oge, %66, %67 : vector<8x512xf32>
    %cst_43 = arith.constant 0.00999999977 : f32
    %69 = vector.broadcast %cst_43 : f32 to vector<8x512xf32>
    %70 = arith.mulf %69, %66 : vector<8x512xf32>
    %71 = arith.select %68, %66, %70 : vector<8x512xi1>, vector<8x512xf32>
    %c512 = arith.constant 512 : index
    %c0_44 = arith.constant 0 : index
    %72 = vector.load %arg6[%c512, %c0_44] : memref<1024x11xf32, #tpu.memory_space<vmem>>, vector<512x11xf32>
    %cst_45 = arith.constant dense<0.000000e+00> : vector<8x11xf32>
    %73 = tpu.matmul %71, %72, %cst_45 {dimension_numbers = #tpu.dot_dimension_numbers<[1], [0], [0], [1], [0, 0, 1, 1], [], []>} : vector<8x512xf32>, vector<512x11xf32>, vector<8x11xf32> -> vector<8x11xf32>
    %74 = vector.broadcast %7 : vector<1x11xf32> to vector<8x11xf32>
    %75 = arith.addf %73, %74 : vector<8x11xf32>
    %cst_46 = arith.constant 0.000000e+00 : f32
    %76 = vector.broadcast %cst_46 : f32 to vector<8x11xf32>
    %77 = arith.cmpf oge, %75, %76 : vector<8x11xf32>
    %cst_47 = arith.constant 0.00999999977 : f32
    %78 = vector.broadcast %cst_47 : f32 to vector<8x11xf32>
    %79 = arith.mulf %78, %75 : vector<8x11xf32>
    %80 = arith.select %77, %75, %79 : vector<8x11xi1>, vector<8x11xf32>
    %81 = arith.addf %51, %80 : vector<8x11xf32>
    %c0_48 = arith.constant 0 : index
    %c0_49 = arith.constant 0 : index
    %82 = vector.load %arg9[%c0_48, %c0_49] : memref<8x11xf32, #tpu.memory_space<vmem>>, vector<8x11xf32>
    tpu.vector_store %arg9[%c0_48, %c0_49], %81 {strides = array<i32>} : memref<8x11xf32, #tpu.memory_space<vmem>>, vector<8x11xf32>,
    %83 = vector.broadcast %8 : vector<1x11xf32> to vector<8x11xf32>
    %84 = arith.mulf %81, %83 : vector<8x11xf32>
    %cst_50 = arith.constant dense<0.000000e+00> : vector<8xf32>
    %85 = vector.multi_reduction <add>, %84, %cst_50 [1] : vector<8x11xf32> to vector<8xf32>
    %86 = vector.shape_cast %85 : vector<8xf32> to vector<8x1xf32>
    %87 = vector.broadcast %9 : vector<1x1xf32> to vector<8x1xf32>
    %88 = arith.addf %86, %87 : vector<8x1xf32>
    %cst_51 = arith.constant 5.000000e-01 : f32
    %89 = vector.broadcast %cst_51 : f32 to vector<8x1xf32>
    %90 = arith.mulf %89, %88 : vector<8x1xf32>
    %91 = math.tanh %90 : vector<8x1xf32>
    %cst_52 = arith.constant 1.000000e+00 : f32
    %92 = vector.broadcast %cst_52 : f32 to vector<8x1xf32>
    %93 = arith.addf %91, %92 : vector<8x1xf32>
    %cst_53 = arith.constant 5.000000e-01 : f32
    %94 = vector.broadcast %cst_53 : f32 to vector<8x1xf32>
    %95 = arith.mulf %94, %93 : vector<8x1xf32>
    %c0_54 = arith.constant 0 : index
    %c0_55 = arith.constant 0 : index
    %96 = vector.load %arg10[%c0_54, %c0_55] : memref<8x1xf32, #tpu.memory_space<vmem>>, vector<8x1xf32>
    tpu.vector_store %arg10[%c0_54, %c0_55], %95 {strides = array<i32>} : memref<8x1xf32, #tpu.memory_space<vmem>>, vector<8x1xf32>,
    return
  }
}

</mosaic_0001>

<llo_original>
// kernel: clinnet_forward.1
$region0: #{clinnet_forward.1}
  #allocation0 [shape = 'u32[]', space=smem, size = 0x4, offset = 0x4, fixed_abs, tag = 'smem constant byte address 0x4 - core index']
  #allocation1 [shape = 'u32[144,128]{1,0:T(1,128)}', space=vmem, size = 0x12000, scoped, tag = 'internal scratch']
  %s0 = inlined_call_operand.vmem [shape: f32[16,8], index: 0, kind: input, shape index: {}]
  %s1 = inlined_call_operand.vmem [shape: f32[8,3], index: 1, kind: input, shape index: {}]
  %s2 = inlined_call_operand.vmem [shape: f32[8,512], index: 2, kind: input, shape index: {}]
  %s3 = inlined_call_operand.vmem [shape: bf16[512,512], index: 3, kind: input, shape index: {}]
  %s4 = inlined_call_operand.vmem [shape: f32[3,512], index: 4, kind: input, shape index: {}]
  %s5 = inlined_call_operand.vmem [shape: bf16[512,512], index: 5, kind: input, shape index: {}]
  %s6 = inlined_call_operand.vmem [shape: f32[1024,11], index: 6, kind: input, shape index: {}]
  %s7 = inlined_call_operand.vmem [shape: f32[6,512], index: 7, kind: input, shape index: {}]
  %s8 = inlined_call_operand.vmem [shape: f32[4,11], index: 8, kind: input, shape index: {}]
  %s9 = inlined_call_operand.hbm [shape: f32[8,11], index: 9, kind: output, shape index: {0}]
  %s10 = inlined_call_operand.vmem [shape: f32[8,1], index: 10, kind: output, shape index: {1}]
  %11 = xla_tuple %s9, %s10
  %s12 = sld [smem:[#allocation0]]
  $region54: #{clinnet_forward.1} parent=0
    _
  %s14 = ssub.s32 1, %s12
  %s15 = scalar_select 0, %s14, %s12
  $region1: #{clinnet_forward.1} parent=0
    #allocation2 [shape = 'u8[4096]{0}', space=vmem, size = 0x1000, scoped, tag = 'output window, operand 0, single buffered']
    #allocation3 [shape = 's32[1]{0}', space=sflag, size = 0x4, scoped, tag = 'scoped memory for clinnet_forward.1']
    %16 = vsyncpa [#allocation3], 0
    // Predicated region
    $region2: #{clinnet_forward.1} parent=1 // pred_check
      _
    $region3: #{clinnet_forward.1} parent=1 // pred_check_branch
      %18 = sbr.rel (0) target = $region5
    $region4: #{clinnet_forward.1} parent=1 // pred_region
      _
    $region5: #{clinnet_forward.1} parent=1 // pred_fallthru
      _
    // Predicated region
    $region6: #{clinnet_forward.1} parent=1 // pred_check
      _
    $region7: #{clinnet_forward.1} parent=1 // pred_check_branch
      %20 = sbr.rel (0) target = $region9
    $region8: #{clinnet_forward.1} parent=1 // pred_region
      _
    $region9: #{clinnet_forward.1} parent=1 // pred_fallthru
      _
    // Predicated region
    $region10: #{clinnet_forward.1} parent=1 // pred_check
      _
    $region11: #{clinnet_forward.1} parent=1 // pred_check_branch
      %22 = sbr.rel (0) target = $region13
    $region12: #{clinnet_forward.1} parent=1 // pred_region
      _
    $region13: #{clinnet_forward.1} parent=1 // pred_fallthru
      _
    // Predicated region
    $region14: #{clinnet_forward.1} parent=1 // pred_check
      _
    $region15: #{clinnet_forward.1} parent=1 // pred_check_branch
      %24 = sbr.rel (0) target = $region17
    $region16: #{clinnet_forward.1} parent=1 // pred_region
      _
    $region17: #{clinnet_forward.1} parent=1 // pred_fallthru
      _
    // Predicated region
    $region18: #{clinnet_forward.1} parent=1 // pred_check
      _
    $region19: #{clinnet_forward.1} parent=1 // pred_check_branch
      %26 = sbr.rel (0) target = $region21
    $region20: #{clinnet_forward.1} parent=1 // pred_region
      _
    $region21: #{clinnet_forward.1} parent=1 // pred_fallthru
      _
    // Predicated region
    $region22: #{clinnet_forward.1} parent=1 // pred_check
      _
    $region23: #{clinnet_forward.1} parent=1 // pred_check_branch
      %28 = sbr.rel (0) target = $region25
    $region24: #{clinnet_forward.1} parent=1 // pred_region
      _
    $region25: #{clinnet_forward.1} parent=1 // pred_fallthru
      _
    // Predicated region
    $region26: #{clinnet_forward.1} parent=1 // pred_check
      _
    $region27: #{clinnet_forward.1} parent=1 // pred_check_branch
      %30 = sbr.rel (0) target = $region29
    $region28: #{clinnet_forward.1} parent=1 // pred_region
      _
    $region29: #{clinnet_forward.1} parent=1 // pred_fallthru
      _
    // Predicated region
    $region30: #{clinnet_forward.1} parent=1 // pred_check
      _
    $region31: #{clinnet_forward.1} parent=1 // pred_check_branch
      %32 = sbr.rel (0) target = $region33
    $region32: #{clinnet_forward.1} parent=1 // pred_region
      _
    $region33: #{clinnet_forward.1} parent=1 // pred_fallthru
      _
    // Predicated region
    $region34: #{clinnet_forward.1} parent=1 // pred_check
      _
    $region35: #{clinnet_forward.1} parent=1 // pred_check_branch
      %34 = sbr.rel (0) target = $region37
    $region36: #{clinnet_forward.1} parent=1 // pred_region
      _
    $region37: #{clinnet_forward.1} parent=1 // pred_fallthru
      _
    %v35 = vld [vmem:[%s7] ss:$8 sm:$0xf]
    %s36 = scalar_lea.vmem %s7, 1
    %v37 = vld [vmem:[%s36] ss:$8 sm:$0xf]
    %s38 = scalar_lea.vmem %s7, 2
    %v39 = vld [vmem:[%s38] ss:$8 sm:$0xf]
    %s40 = scalar_lea.vmem %s7, 3
    %v41 = vld [vmem:[%s40] ss:$8 sm:$0xf]
    %s42 = scalar_lea.vmem %s7, 4
    %v43 = vld [vmem:[%s42] ss:$8 sm:$0xf]
    %s44 = scalar_lea.vmem %s7, 5
    %v45 = vld [vmem:[%s44] ss:$8 sm:$0xf]
    %v46 = vld [vmem:[%s8] sm:$0x1]
    %v47 = vld [vmem:[%s8 + $0x1] sm:$0x1]
    %v48 = vld [vmem:[%s8 + $0x2] sm:$0x1]
    %v49 = vld [vmem:[%s8 + $0x3] sm:$0x1]
    %v50 = vld [vmem:[%s0] sm:$0xff]
    %v51 = vld [vmem:[%s0 + $0x8] sm:$0xff]
    %v52 = vld [vmem:[%s2] sm:$0xff]
    %v53 = vld [vmem:[%s2 + $0x8] sm:$0xff]
    %v54 = vld [vmem:[%s2 + $0x10] sm:$0xff]
    %v55 = vld [vmem:[%s2 + $0x18] sm:$0xff]
    %v57 = vlaneseq
    %v58 = vshrl.u32 %v57, 7
    %v59 = vsub.s32 0, %v58
    %v60 = vrot.slane %v35, %v59
    %v61 = vlaneseq
    %v62 = vshrl.u32 %v61, 7
    %v63 = vsub.s32 1, %v62
    %v64 = vrot.slane %v35, %v63
    %v65 = vlaneseq
    %v66 = vshrl.u32 %v65, 7
    %v67 = vsub.s32 2, %v66
    %v68 = vrot.slane %v35, %v67
    %v69 = vlaneseq
    %v70 = vshrl.u32 %v69, 7
    %v71 = vsub.s32 3, %v70
    %v72 = vrot.slane %v35, %v71
    %vm77 = vcmask 64512
    %v79 = vsel %vm77, %v50, 0
    %v82 = vsel %vm77, %v51, 0
    %84 = vmatprep.subr.mxu0 %v53
    %85 = vmatpush1.msra.mxu0 %v52
    %86 = vmatprep.subr.mxu0 0.0
    %87 = vmatpush1.msra.mxu0 0.0
    %88 = vmatprep.subr.mxu0 0.0
    %89 = vmatpush1.msra.mxu0 0.0
    %90 = vmatprep.subr.mxu0 0.0
    %91 = vmatpush1.msra.mxu0 0.0
    %92 = vmatprep.subr.mxu0 0.0
    %93 = vmatpush1.msra.mxu0 0.0
    %94 = vmatprep.subr.mxu0 0.0
    %95 = vmatpush1.msra.mxu0 0.0
    %96 = vmatprep.subr.mxu0 0.0
    %97 = vmatpush1.msra.mxu0 0.0
    %98 = vmatprep.subr.mxu0 0.0
    %99 = vmatpush1.msra.mxu0 0.0
    %100 = vmatprep.subr.mxu0 0.0
    %101 = vmatpush1.msra.mxu0 0.0
    %102 = vmatprep.subr.mxu0 0.0
    %103 = vmatpush1.msra.mxu0 0.0
    %104 = vmatprep.subr.mxu0 0.0
    %105 = vmatpush1.msra.mxu0 0.0
    %106 = vmatprep.subr.mxu0 0.0
    %107 = vmatpush1.msra.mxu0 0.0
    %108 = vmatprep.subr.mxu0 0.0
    %109 = vmatpush1.msra.mxu0 0.0
    %110 = vmatprep.subr.mxu0 0.0
    %111 = vmatpush1.msra.mxu0 0.0
    %112 = vmatprep.subr.mxu0 0.0
    %113 = vmatpush1.msra.mxu0 0.0
    %114 = vmatprep.subr.mxu0 0.0
    %115 = vmatpush1.msra.mxu0 0.0
    %116 = vmatprep.subr.mxu0 0.0
    %117 = vmatpush1.msra.mxu0 0.0
    %118 = vmatprep.subr.mxu0 0.0
    %119 = vmatpush1.msra.mxu0 0.0
    %120 = vmatprep.subr.mxu0 0.0
    %121 = vmatpush1.msra.mxu0 0.0
    %122 = vmatprep.subr.mxu0 0.0
    %123 = vmatpush1.msra.mxu0 0.0
    %124 = vmatprep.subr.mxu0 0.0
    %125 = vmatpush1.msra.mxu0 0.0
    %126 = vmatprep.subr.mxu0 0.0
    %127 = vmatpush1.msra.mxu0 0.0
    %128 = vmatprep.subr.mxu0 0.0
    %129 = vmatpush1.msra.mxu0 0.0
    %130 = vmatprep.subr.mxu0 0.0
    %131 = vmatpush1.msra.mxu0 0.0
    %132 = vmatprep.subr.mxu0 0.0
    %133 = vmatpush1.msra.mxu0 0.0
    %134 = vmatprep.subr.mxu0 0.0
    %135 = vmatpush1.msra.mxu0 0.0
    %136 = vmatprep.subr.mxu0 0.0
    %137 = vmatpush1.msra.mxu0 0.0
    %138 = vmatprep.subr.mxu0 0.0
    %139 = vmatpush1.msra.mxu0 0.0
    %140 = vmatprep.subr.mxu0 0.0
    %141 = vmatpush1.msra.mxu0 0.0
    %142 = vmatprep.subr.mxu0 0.0
    %143 = vmatpush1.msra.mxu0 0.0
    %144 = vmatprep.subr.mxu0 0.0
    %145 = vmatpush1.msra.mxu0 0.0
    %146 = vmatprep.subr.mxu0 0.0
    %147 = vmatpush1.msra.mxu0 0.0
    %148 = vmatprep.mubr.f32.mxu0 0.0
    %149 = vmatmul.mubr.f32.gmra.mrb[0].mxu0 %v79
    %v150 = vpop.f32.mrb[0].mxu0
    %v151 = vadd.f32 %v60, %v150
    %v152 = vpop.f32.mrb[0].mxu0
    %v153 = vadd.f32 %v64, %v152
    %154 = vmatprep.mubr.f32.mxu0 0.0
    %155 = vmatmul.mubr.f32.gmra.mrb[0].mxu0 %v82
    %v156 = vpop.f32.mrb[0].mxu0
    %v157 = vadd.f32 %v60, %v156
    %v158 = vpop.f32.mrb[0].mxu0
    %v159 = vadd.f32 %v64, %v158
    %160 = vdwg.mxu0
    %161 = vmatprep.subr.mxu0 %v55
    %162 = vmatpush1.msra.mxu0 %v54
    %163 = vmatprep.subr.mxu0 0.0
    %164 = vmatpush1.msra.mxu0 0.0
    %165 = vmatprep.subr.mxu0 0.0
    %166 = vmatpush1.msra.mxu0 0.0
    %167 = vmatprep.subr.mxu0 0.0
    %168 = vmatpush1.msra.mxu0 0.0
    %169 = vmatprep.subr.mxu0 0.0
    %170 = vmatpush1.msra.mxu0 0.0
    %171 = vmatprep.subr.mxu0 0.0
    %172 = vmatpush1.msra.mxu0 0.0
    %173 = vmatprep.subr.mxu0 0.0
    %174 = vmatpush1.msra.mxu0 0.0
    %175 = vmatprep.subr.mxu0 0.0
    %176 = vmatpush1.msra.mxu0 0.0
    %177 = vmatprep.subr.mxu0 0.0
    %178 = vmatpush1.msra.mxu0 0.0
    %179 = vmatprep.subr.mxu0 0.0
    %180 = vmatpush1.msra.mxu0 0.0
    %181 = vmatprep.subr.mxu0 0.0
    %182 = vmatpush1.msra.mxu0 0.0
    %183 = vmatprep.subr.mxu0 0.0
    %184 = vmatpush1.msra.mxu0 0.0
    %185 = vmatprep.subr.mxu0 0.0
    %186 = vmatpush1.msra.mxu0 0.0
    %187 = vmatprep.subr.mxu0 0.0
    %188 = vmatpush1.msra.mxu0 0.0
    %189 = vmatprep.subr.mxu0 0.0
    %190 = vmatpush1.msra.mxu0 0.0
    %191 = vmatprep.subr.mxu0 0.0
    %192 = vmatpush1.msra.mxu0 0.0
    %193 = vmatprep.subr.mxu0 0.0
    %194 = vmatpush1.msra.mxu0 0.0
    %195 = vmatprep.subr.mxu0 0.0
    %196 = vmatpush1.msra.mxu0 0.0
    %197 = vmatprep.subr.mxu0 0.0
    %198 = vmatpush1.msra.mxu0 0.0
    %199 = vmatprep.subr.mxu0 0.0
    %200 = vmatpush1.msra.mxu0 0.0
    %201 = vmatprep.subr.mxu0 0.0
    %202 = vmatpush1.msra.mxu0 0.0
    %203 = vmatprep.subr.mxu0 0.0
    %204 = vmatpush1.msra.mxu0 0.0
    %205 = vmatprep.subr.mxu0 0.0
    %206 = vmatpush1.msra.mxu0 0.0
    %207 = vmatprep.subr.mxu0 0.0
    %208 = vmatpush1.msra.mxu0 0.0
    %209 = vmatprep.subr.mxu0 0.0
    %210 = vmatpush1.msra.mxu0 0.0
    %211 = vmatprep.subr.mxu0 0.0
    %212 = vmatpush1.msra.mxu0 0.0
    %213 = vmatprep.subr.mxu0 0.0
    %214 = vmatpush1.msra.mxu0 0.0
    %215 = vmatprep.subr.mxu0 0.0
    %216 = vmatpush1.msra.mxu0 0.0
    %217 = vmatprep.subr.mxu0 0.0
    %218 = vmatpush1.msra.mxu0 0.0
    %219 = vmatprep.subr.mxu0 0.0
    %220 = vmatpush1.msra.mxu0 0.0
    %221 = vmatprep.subr.mxu0 0.0
    %222 = vmatpush1.msra.mxu0 0.0
    %223 = vmatprep.subr.mxu0 0.0
    %224 = vmatpush1.msra.mxu0 0.0
    %225 = vmatprep.mubr.f32.mxu0 0.0
    %226 = vmatmul.mubr.f32.gmra.mrb[0].mxu0 %v79
    %v227 = vpop.f32.mrb[0].mxu0
    %v228 = vadd.f32 %v68, %v227
    %v229 = vpop.f32.mrb[0].mxu0
    %v230 = vadd.f32 %v72, %v229
    %231 = vmatprep.mubr.f32.mxu0 0.0
    %232 = vmatmul.mubr.f32.gmra.mrb[0].mxu0 %v82
    %v233 = vpop.f32.mrb[0].mxu0
    %v234 = vadd.f32 %v68, %v233
    %v235 = vpop.f32.mrb[0].mxu0
    %v236 = vadd.f32 %v72, %v235
    %237 = vdwg.mxu0
    %vm238 = vcmp.ge.f32.partialorder %v151, 0.0
    %vm239 = vcmp.ge.f32.partialorder %v153, 0.0
    %vm240 = vcmp.ge.f32.partialorder %v228, 0.0
    %vm241 = vcmp.ge.f32.partialorder %v230, 0.0
    %vm242 = vcmp.ge.f32.partialorder %v157, 0.0
    %vm243 = vcmp.ge.f32.partialorder %v159, 0.0
    %vm244 = vcmp.ge.f32.partialorder %v234, 0.0
    %vm245 = vcmp.ge.f32.partialorder %v236, 0.0
    %v246 = vmul.f32 %v151, 0.01
    %v247 = vmul.f32 %v153, 0.01
    %v248 = vmul.f32 %v228, 0.01
    %v249 = vmul.f32 %v230, 0.01
    %v250 = vmul.f32 %v157, 0.01
    %v251 = vmul.f32 %v159, 0.01
    %v252 = vmul.f32 %v234, 0.01
    %v253 = vmul.f32 %v236, 0.01
    %v254 = vsel %vm238, %v151, %v246
    %v255 = vsel %vm239, %v153, %v247
    %v256 = vsel %vm240, %v228, %v248
    %v257 = vsel %vm241, %v230, %v249
    %v258 = vsel %vm242, %v157, %v250
    %v259 = vsel %vm243, %v159, %v251
    %v260 = vsel %vm244, %v234, %v252
    %v261 = vsel %vm245, %v236, %v253
    %v262 = vpack.c.bf16 %v258, %v254
    %v263 = vpack.c.bf16 %v259, %v255
    %v264 = vpack.c.bf16 %v260, %v256
    %v265 = vpack.c.bf16 %v261, %v257
    %v266 = vld [vmem:[%s3] sm:$0xff]
    %v267 = vld [vmem:[%s3 + $0x8] sm:$0xff]
    %v268 = vld [vmem:[%s3 + $0x10] sm:$0xff]
    %v269 = vld [vmem:[%s3 + $0x18] sm:$0xff]
    %v270 = vld [vmem:[%s3 + $0x20] sm:$0xff]
    %v271 = vld [vmem:[%s3 + $0x28] sm:$0xff]
    %v272 = vld [vmem:[%s3 + $0x30] sm:$0xff]
    %v273 = vld [vmem:[%s3 + $0x38] sm:$0xff]
    %v274 = vld [vmem:[%s3 + $0x40] sm:$0xff]
    %v275 = vld [vmem:[%s3 + $0x48] sm:$0xff]
    %v276 = vld [vmem:[%s3 + $0x50] sm:$0xff]
    %v277 = vld [vmem:[%s3 + $0x58] sm:$0xff]
    %v278 = vld [vmem:[%s3 + $0x60] sm:$0xff]
    %v279 = vld [vmem:[%s3 + $0x68] sm:$0xff]
    %v280 = vld [vmem:[%s3 + $0x70] sm:$0xff]
    %v281 = vld [vmem:[%s3 + $0x78] sm:$0xff]
    %v282 = vld [vmem:[%s3 + $0x80] sm:$0xff]
    %v283 = vld [vmem:[%s3 + $0x88] sm:$0xff]
    %v284 = vld [vmem:[%s3 + $0x90] sm:$0xff]
    %v285 = vld [vmem:[%s3 + $0x98] sm:$0xff]
    %v286 = vld [vmem:[%s3 + $0xa0] sm:$0xff]
    %v287 = vld [vmem:[%s3 + $0xa8] sm:$0xff]
    %v288 = vld [vmem:[%s3 + $0xb0] sm:$0xff]
    %v289 = vld [vmem:[%s3 + $0xb8] sm:$0xff]
    %v290 = vld [vmem:[%s3 + $0xc0] sm:$0xff]
    %v291 = vld [vmem:[%s3 + $0xc8] sm:$0xff]
    %v292 = vld [vmem:[%s3 + $0xd0] sm:$0xff]
    %v293 = vld [vmem:[%s3 + $0xd8] sm:$0xff]
    %v294 = vld [vmem:[%s3 + $0xe0] sm:$0xff]
    %v295 = vld [vmem:[%s3 + $0xe8] sm:$0xff]
    %v296 = vld [vmem:[%s3 + $0xf0] sm:$0xff]
    %v297 = vld [vmem:[%s3 + $0xf8] sm:$0xff]
    %v298 = vld [vmem:[%s3 + $0x100] sm:$0xff]
    %v299 = vld [vmem:[%s3 + $0x108] sm:$0xff]
    %v300 = vld [vmem:[%s3 + $0x110] sm:$0xff]
    %v301 = vld [vmem:[%s3 + $0x118] sm:$0xff]
    %v302 = vld [vmem:[%s3 + $0x120] sm:$0xff]
    %v303 = vld [vmem:[%s3 + $0x128] sm:$0xff]
    %v304 = vld [vmem:[%s3 + $0x130] sm:$0xff]
    %v305 = vld [vmem:[%s3 + $0x138] sm:$0xff]
    %v306 = vld [vmem:[%s3 + $0x140] sm:$0xff]
    %v307 = vld [vmem:[%s3 + $0x148] sm:$0xff]
    %v308 = vld [vmem:[%s3 + $0x150] sm:$0xff]
    %v309 = vld [vmem:[%s3 + $0x158] sm:$0xff]
    %v310 = vld [vmem:[%s3 + $0x160] sm:$0xff]
    %v311 = vld [vmem:[%s3 + $0x168] sm:$0xff]
    %v312 = vld [vmem:[%s3 + $0x170] sm:$0xff]
    %v313 = vld [vmem:[%s3 + $0x178] sm:$0xff]
    %v314 = vld [vmem:[%s3 + $0x180] sm:$0xff]
    %v315 = vld [vmem:[%s3 + $0x188] sm:$0xff]
    %v316 = vld [vmem:[%s3 + $0x190] sm:$0xff]
    %v317 = vld [vmem:[%s3 + $0x198] sm:$0xff]
    %v318 = vld [vmem:[%s3 + $0x1a0] sm:$0xff]
    %v319 = vld [vmem:[%s3 + $0x1a8] sm:$0xff]
    %v320 = vld [vmem:[%s3 + $0x1b0] sm:$0xff]
    %v321 = vld [vmem:[%s3 + $0x1b8] sm:$0xff]
    %v322 = vld [vmem:[%s3 + $0x1c0] sm:$0xff]
    %v323 = vld [vmem:[%s3 + $0x1c8] sm:$0xff]
    %v324 = vld [vmem:[%s3 + $0x1d0] sm:$0xff]
    %v325 = vld [vmem:[%s3 + $0x1d8] sm:$0xff]
    %v326 = vld [vmem:[%s3 + $0x1e0] sm:$0xff]
    %v327 = vld [vmem:[%s3 + $0x1e8] sm:$0xff]
    %v328 = vld [vmem:[%s3 + $0x1f0] sm:$0xff]
    %v329 = vld [vmem:[%s3 + $0x1f8] sm:$0xff]
    %v330 = vld [vmem:[%s3 + $0x200] sm:$0xff]
    %v331 = vld [vmem:[%s3 + $0x208] sm:$0xff]
    %v332 = vld [vmem:[%s3 + $0x210] sm:$0xff]
    %v333 = vld [vmem:[%s3 + $0x218] sm:$0xff]
    %v334 = vld [vmem:[%s3 + $0x220] sm:$0xff]
    %v335 = vld [vmem:[%s3 + $0x228] sm:$0xff]
    %v336 = vld [vmem:[%s3 + $0x230] sm:$0xff]
    %v337 = vld [vmem:[%s3 + $0x238] sm:$0xff]
    %v338 = vld [vmem:[%s3 + $0x240] sm:$0xff]
    %v339 = vld [vmem:[%s3 + $0x248] sm:$0xff]
    %v340 = vld [vmem:[%s3 + $0x250] sm:$0xff]
    %v341 = vld [vmem:[%s3 + $0x258] sm:$0xff]
    %v342 = vld [vmem:[%s3 + $0x260] sm:$0xff]
    %v343 = vld [vmem:[%s3 + $0x268] sm:$0xff]
    %v344 = vld [vmem:[%s3 + $0x270] sm:$0xff]
    %v345 = vld [vmem:[%s3 + $0x278] sm:$0xff]
    %v346 = vld [vmem:[%s3 + $0x280] sm:$0xff]
    %v347 = vld [vmem:[%s3 + $0x288] sm:$0xff]
    %v348 = vld [vmem:[%s3 + $0x290] sm:$0xff]
    %v349 = vld [vmem:[%s3 + $0x298] sm:$0xff]
    %v350 = vld [vmem:[%s3 + $0x2a0] sm:$0xff]
    %v351 = vld [vmem:[%s3 + $0x2a8] sm:$0xff]
    %v352 = vld [vmem:[%s3 + $0x2b0] sm:$0xff]
    %v353 = vld [vmem:[%s3 + $0x2b8] sm:$0xff]
    %v354 = vld [vmem:[%s3 + $0x2c0] sm:$0xff]
    %v355 = vld [vmem:[%s3 + $0x2c8] sm:$0xff]
    %v356 = vld [vmem:[%s3 + $0x2d0] sm:$0xff]
    %v357 = vld [vmem:[%s3 + $0x2d8] sm:$0xff]
    %v358 = vld [vmem:[%s3 + $0x2e0] sm:$0xff]
    %v359 = vld [vmem:[%s3 + $0x2e8] sm:$0xff]
    %v360 = vld [vmem:[%s3 + $0x2f0] sm:$0xff]
    %v361 = vld [vmem:[%s3 + $0x2f8] sm:$0xff]
    %v362 = vld [vmem:[%s3 + $0x300] sm:$0xff]
    %v363 = vld [vmem:[%s3 + $0x308] sm:$0xff]
    %v364 = vld [vmem:[%s3 + $0x310] sm:$0xff]
    %v365 = vld [vmem:[%s3 + $0x318] sm:$0xff]
    %v366 = vld [vmem:[%s3 + $0x320] sm:$0xff]
    %v367 = vld [vmem:[%s3 + $0x328] sm:$0xff]
    %v368 = vld [vmem:[%s3 + $0x330] sm:$0xff]
    %v369 = vld [vmem:[%s3 + $0x338] sm:$0xff]
    %v370 = vld [vmem:[%s3 + $0x340] sm:$0xff]
    %v371 = vld [vmem:[%s3 + $0x348] sm:$0xff]
    %v372 = vld [vmem:[%s3 + $0x350] sm:$0xff]
    %v373 = vld [vmem:[%s3 + $0x358] sm:$0xff]
    %v374 = vld [vmem:[%s3 + $0x360] sm:$0xff]
    %v375 = vld [vmem:[%s3 + $0x368] sm:$0xff]
    %v376 = vld [vmem:[%s3 + $0x370] sm:$0xff]
    %v377 = vld [vmem:[%s3 + $0x378] sm:$0xff]
    %v378 = vld [vmem:[%s3 + $0x380] sm:$0xff]
    %v379 = vld [vmem:[%s3 + $0x388] sm:$0xff]
    %v380 = vld [vmem:[%s3 + $0x390] sm:$0xff]
    %v381 = vld [vmem:[%s3 + $0x398] sm:$0xff]
    %v382 = vld [vmem:[%s3 + $0x3a0] sm:$0xff]
    %v383 = vld [vmem:[%s3 + $0x3a8] sm:$0xff]
    %v384 = vld [vmem:[%s3 + $0x3b0] sm:$0xff]
    %v385 = vld [vmem:[%s3 + $0x3b8] sm:$0xff]
    %v386 = vld [vmem:[%s3 + $0x3c0] sm:$0xff]
    %v387 = vld [vmem:[%s3 + $0x3c8] sm:$0xff]
    %v388 = vld [vmem:[%s3 + $0x3d0] sm:$0xff]
    %v389 = vld [vmem:[%s3 + $0x3d8] sm:$0xff]
    %v390 = vld [vmem:[%s3 + $0x3e0] sm:$0xff]
    %v391 = vld [vmem:[%s3 + $0x3e8] sm:$0xff]
    %v392 = vld [vmem:[%s3 + $0x3f0] sm:$0xff]
    %v393 = vld [vmem:[%s3 + $0x3f8] sm:$0xff]
    %v395 = vlaneseq
    %v396 = vshrl.u32 %v395, 7
    %v397 = vsub.s32 0, %v396
    %v398 = vrot.slane %v37, %v397
    %v399 = vlaneseq
    %v400 = vshrl.u32 %v399, 7
    %v401 = vsub.s32 1, %v400
    %v402 = vrot.slane %v37, %v401
    %v403 = vlaneseq
    %v404 = vshrl.u32 %v403, 7
    %v405 = vsub.s32 2, %v404
    %v406 = vrot.slane %v37, %v405
    %v407 = vlaneseq
    %v408 = vshrl.u32 %v407, 7
    %v409 = vsub.s32 3, %v408
    %v410 = vrot.slane %v37, %v409
    %v543 = vunpack.c.l.b16 %v266
    %v544 = vunpack.c.h.b16 %v266
    %v545 = vunpack.c.l.b16 %v267
    %v546 = vunpack.c.h.b16 %v267
    %v547 = vunpack.c.l.b16 %v268
    %v548 = vunpack.c.h.b16 %v268
    %v549 = vunpack.c.l.b16 %v269
    %v550 = vunpack.c.h.b16 %v269
    %v551 = vunpack.c.l.b16 %v270
    %v552 = vunpack.c.h.b16 %v270
    %v553 = vunpack.c.l.b16 %v271
    %v554 = vunpack.c.h.b16 %v271
    %v555 = vunpack.c.l.b16 %v272
    %v556 = vunpack.c.h.b16 %v272
    %v557 = vunpack.c.l.b16 %v273
    %v558 = vunpack.c.h.b16 %v273
    %v559 = vunpack.c.l.b16 %v274
    %v560 = vunpack.c.h.b16 %v274
    %v561 = vunpack.c.l.b16 %v275
    %v562 = vunpack.c.h.b16 %v275
    %v563 = vunpack.c.l.b16 %v276
    %v564 = vunpack.c.h.b16 %v276
    %v565 = vunpack.c.l.b16 %v277
    %v566 = vunpack.c.h.b16 %v277
    %v567 = vunpack.c.l.b16 %v278
    %v568 = vunpack.c.h.b16 %v278
    %v569 = vunpack.c.l.b16 %v279
    %v570 = vunpack.c.h.b16 %v279
    %v571 = vunpack.c.l.b16 %v280
    %v572 = vunpack.c.h.b16 %v280
    %v573 = vunpack.c.l.b16 %v281
    %v574 = vunpack.c.h.b16 %v281
    %v575 = vunpack.c.l.b16 %v282
    %v576 = vunpack.c.h.b16 %v282
    %v577 = vunpack.c.l.b16 %v283
    %v578 = vunpack.c.h.b16 %v283
    %v579 = vunpack.c.l.b16 %v284
    %v580 = vunpack.c.h.b16 %v284
    %v581 = vunpack.c.l.b16 %v285
    %v582 = vunpack.c.h.b16 %v285
    %v583 = vunpack.c.l.b16 %v286
    %v584 = vunpack.c.h.b16 %v286
    %v585 = vunpack.c.l.b16 %v287
    %v586 = vunpack.c.h.b16 %v287
    %v587 = vunpack.c.l.b16 %v288
    %v588 = vunpack.c.h.b16 %v288
    %v589 = vunpack.c.l.b16 %v289
    %v590 = vunpack.c.h.b16 %v289
    %v591 = vunpack.c.l.b16 %v290
    %v592 = vunpack.c.h.b16 %v290
    %v593 = vunpack.c.l.b16 %v291
    %v594 = vunpack.c.h.b16 %v291
    %v595 = vunpack.c.l.b16 %v292
    %v596 = vunpack.c.h.b16 %v292
    %v597 = vunpack.c.l.b16 %v293
    %v598 = vunpack.c.h.b16 %v293
    %v599 = vunpack.c.l.b16 %v294
    %v600 = vunpack.c.h.b16 %v294
    %v601 = vunpack.c.l.b16 %v295
    %v602 = vunpack.c.h.b16 %v295
    %v603 = vunpack.c.l.b16 %v296
    %v604 = vunpack.c.h.b16 %v296
    %v605 = vunpack.c.l.b16 %v297
    %v606 = vunpack.c.h.b16 %v297
    %v607 = vunpack.c.l.b16 %v298
    %v608 = vunpack.c.h.b16 %v298
    %v609 = vunpack.c.l.b16 %v299
    %v610 = vunpack.c.h.b16 %v299
    %v611 = vunpack.c.l.b16 %v300
    %v612 = vunpack.c.h.b16 %v300
    %v613 = vunpack.c.l.b16 %v301
    %v614 = vunpack.c.h.b16 %v301
    %v615 = vunpack.c.l.b16 %v302
    %v616 = vunpack.c.h.b16 %v302
    %v617 = vunpack.c.l.b16 %v303
    %v618 = vunpack.c.h.b16 %v303
    %v619 = vunpack.c.l.b16 %v304
    %v620 = vunpack.c.h.b16 %v304
    %v621 = vunpack.c.l.b16 %v305
    %v622 = vunpack.c.h.b16 %v305
    %v623 = vunpack.c.l.b16 %v306
    %v624 = vunpack.c.h.b16 %v306
    %v625 = vunpack.c.l.b16 %v307
    %v626 = vunpack.c.h.b16 %v307
    %v627 = vunpack.c.l.b16 %v308
    %v628 = vunpack.c.h.b16 %v308
    %v629 = vunpack.c.l.b16 %v309
    %v630 = vunpack.c.h.b16 %v309
    %v631 = vunpack.c.l.b16 %v310
    %v632 = vunpack.c.h.b16 %v310
    %v633 = vunpack.c.l.b16 %v311
    %v634 = vunpack.c.h.b16 %v311
    %v635 = vunpack.c.l.b16 %v312
    %v636 = vunpack.c.h.b16 %v312
    %v637 = vunpack.c.l.b16 %v313
    %v638 = vunpack.c.h.b16 %v313
    %v639 = vunpack.c.l.b16 %v314
    %v640 = vunpack.c.h.b16 %v314
    %v641 = vunpack.c.l.b16 %v315
    %v642 = vunpack.c.h.b16 %v315
    %v643 = vunpack.c.l.b16 %v316
    %v644 = vunpack.c.h.b16 %v316
    %v645 = vunpack.c.l.b16 %v317
    %v646 = vunpack.c.h.b16 %v317
    %v647 = vunpack.c.l.b16 %v318
    %v648 = vunpack.c.h.b16 %v318
    %v649 = vunpack.c.l.b16 %v319
    %v650 = vunpack.c.h.b16 %v319
    %v651 = vunpack.c.l.b16 %v320
    %v652 = vunpack.c.h.b16 %v320
    %v653 = vunpack.c.l.b16 %v321
    %v654 = vunpack.c.h.b16 %v321
    %v655 = vunpack.c.l.b16 %v322
    %v656 = vunpack.c.h.b16 %v322
    %v657 = vunpack.c.l.b16 %v323
    %v658 = vunpack.c.h.b16 %v323
    %v659 = vunpack.c.l.b16 %v324
    %v660 = vunpack.c.h.b16 %v324
    %v661 = vunpack.c.l.b16 %v325
    %v662 = vunpack.c.h.b16 %v325
    %v663 = vunpack.c.l.b16 %v326
    %v664 = vunpack.c.h.b16 %v326
    %v665 = vunpack.c.l.b16 %v327
    %v666 = vunpack.c.h.b16 %v327
    %v667 = vunpack.c.l.b16 %v328
    %v668 = vunpack.c.h.b16 %v328
    %v669 = vunpack.c.l.b16 %v329
    %v670 = vunpack.c.h.b16 %v329
    %v671 = vunpack.c.l.b16 %v330
    %v672 = vunpack.c.h.b16 %v330
    %v673 = vunpack.c.l.b16 %v331
    %v674 = vunpack.c.h.b16 %v331
    %v675 = vunpack.c.l.b16 %v332
    %v676 = vunpack.c.h.b16 %v332
    %v677 = vunpack.c.l.b16 %v333
    %v678 = vunpack.c.h.b16 %v333
    %v679 = vunpack.c.l.b16 %v334
    %v680 = vunpack.c.h.b16 %v334
    %v681 = vunpack.c.l.b16 %v335
    %v682 = vunpack.c.h.b16 %v335
    %v683 = vunpack.c.l.b16 %v336
    %v684 = vunpack.c.h.b16 %v336
    %v685 = vunpack.c.l.b16 %v337
    %v686 = vunpack.c.h.b16 %v337
    %v687 = vunpack.c.l.b16 %v338
    %v688 = vunpack.c.h.b16 %v338
    %v689 = vunpack.c.l.b16 %v339
    %v690 = vunpack.c.h.b16 %v339
    %v691 = vunpack.c.l.b16 %v340
    %v692 = vunpack.c.h.b16 %v340
    %v693 = vunpack.c.l.b16 %v341
    %v694 = vunpack.c.h.b16 %v341
    %v695 = vunpack.c.l.b16 %v342
    %v696 = vunpack.c.h.b16 %v342
    %v697 = vunpack.c.l.b16 %v343
    %v698 = vunpack.c.h.b16 %v343
    %v699 = vunpack.c.l.b16 %v344
    %v700 = vunpack.c.h.b16 %v344
    %v701 = vunpack.c.l.b16 %v345
    %v702 = vunpack.c.h.b16 %v345
    %v703 = vunpack.c.l.b16 %v346
    %v704 = vunpack.c.h.b16 %v346
    %v705 = vunpack.c.l.b16 %v347
    %v706 = vunpack.c.h.b16 %v347
    %v707 = vunpack.c.l.b16 %v348
    %v708 = vunpack.c.h.b16 %v348
    %v709 = vunpack.c.l.b16 %v349
    %v710 = vunpack.c.h.b16 %v349
    %v711 = vunpack.c.l.b16 %v350
    %v712 = vunpack.c.h.b16 %v350
    %v713 = vunpack.c.l.b16 %v351
    %v714 = vunpack.c.h.b16 %v351
    %v715 = vunpack.c.l.b16 %v352
    %v716 = vunpack.c.h.b16 %v352
    %v717 = vunpack.c.l.b16 %v353
    %v718 = vunpack.c.h.b16 %v353
    %v719 = vunpack.c.l.b16 %v354
    %v720 = vunpack.c.h.b16 %v354
    %v721 = vunpack.c.l.b16 %v355
    %v722 = vunpack.c.h.b16 %v355
    %v723 = vunpack.c.l.b16 %v356
    %v724 = vunpack.c.h.b16 %v356
    %v725 = vunpack.c.l.b16 %v357
    %v726 = vunpack.c.h.b16 %v357
    %v727 = vunpack.c.l.b16 %v358
    %v728 = vunpack.c.h.b16 %v358
    %v729 = vunpack.c.l.b16 %v359
    %v730 = vunpack.c.h.b16 %v359
    %v731 = vunpack.c.l.b16 %v360
    %v732 = vunpack.c.h.b16 %v360
    %v733 = vunpack.c.l.b16 %v361
    %v734 = vunpack.c.h.b16 %v361
    %v735 = vunpack.c.l.b16 %v362
    %v736 = vunpack.c.h.b16 %v362
    %v737 = vunpack.c.l.b16 %v363
    %v738 = vunpack.c.h.b16 %v363
    %v739 = vunpack.c.l.b16 %v364
    %v740 = vunpack.c.h.b16 %v364
    %v741 = vunpack.c.l.b16 %v365
    %v742 = vunpack.c.h.b16 %v365
    %v743 = vunpack.c.l.b16 %v366
    %v744 = vunpack.c.h.b16 %v366
    %v745 = vunpack.c.l.b16 %v367
    %v746 = vunpack.c.h.b16 %v367
    %v747 = vunpack.c.l.b16 %v368
    %v748 = vunpack.c.h.b16 %v368
    %v749 = vunpack.c.l.b16 %v369
    %v750 = vunpack.c.h.b16 %v369
    %v751 = vunpack.c.l.b16 %v370
    %v752 = vunpack.c.h.b16 %v370
    %v753 = vunpack.c.l.b16 %v371
    %v754 = vunpack.c.h.b16 %v371
    %v755 = vunpack.c.l.b16 %v372
    %v756 = vunpack.c.h.b16 %v372
    %v757 = vunpack.c.l.b16 %v373
    %v758 = vunpack.c.h.b16 %v373
    %v759 = vunpack.c.l.b16 %v374
    %v760 = vunpack.c.h.b16 %v374
    %v761 = vunpack.c.l.b16 %v375
    %v762 = vunpack.c.h.b16 %v375
    %v763 = vunpack.c.l.b16 %v376
    %v764 = vunpack.c.h.b16 %v376
    %v765 = vunpack.c.l.b16 %v377
    %v766 = vunpack.c.h.b16 %v377
    %v767 = vunpack.c.l.b16 %v378
    %v768 = vunpack.c.h.b16 %v378
    %v769 = vunpack.c.l.b16 %v379
    %v770 = vunpack.c.h.b16 %v379
    %v771 = vunpack.c.l.b16 %v380
    %v772 = vunpack.c.h.b16 %v380
    %v773 = vunpack.c.l.b16 %v381
    %v774 = vunpack.c.h.b16 %v381
    %v775 = vunpack.c.l.b16 %v382
    %v776 = vunpack.c.h.b16 %v382
    %v777 = vunpack.c.l.b16 %v383
    %v778 = vunpack.c.h.b16 %v383
    %v779 = vunpack.c.l.b16 %v384
    %v780 = vunpack.c.h.b16 %v384
    %v781 = vunpack.c.l.b16 %v385
    %v782 = vunpack.c.h.b16 %v385
    %v783 = vunpack.c.l.b16 %v386
    %v784 = vunpack.c.h.b16 %v386
    %v785 = vunpack.c.l.b16 %v387
    %v786 = vunpack.c.h.b16 %v387
    %v787 = vunpack.c.l.b16 %v388
    %v788 = vunpack.c.h.b16 %v388
    %v789 = vunpack.c.l.b16 %v389
    %v790 = vunpack.c.h.b16 %v389
    %v791 = vunpack.c.l.b16 %v390
    %v792 = vunpack.c.h.b16 %v390
    %v793 = vunpack.c.l.b16 %v391
    %v794 = vunpack.c.h.b16 %v391
    %v795 = vunpack.c.l.b16 %v392
    %v796 = vunpack.c.h.b16 %v392
    %v797 = vunpack.c.l.b16 %v393
    %v798 = vunpack.c.h.b16 %v393
    %v799 = vpack.c.b16 %v547, %v543
    %v800 = vpack.c.b16 %v548, %v544
    %v801 = vpack.c.b16 %v549, %v545
    %v802 = vpack.c.b16 %v550, %v546
    %v803 = vpack.c.b16 %v555, %v551
    %v804 = vpack.c.b16 %v556, %v552
    %v805 = vpack.c.b16 %v557, %v553
    %v806 = vpack.c.b16 %v558, %v554
    %v807 = vpack.c.b16 %v563, %v559
    %v808 = vpack.c.b16 %v564, %v560
    %v809 = vpack.c.b16 %v565, %v561
    %v810 = vpack.c.b16 %v566, %v562
    %v811 = vpack.c.b16 %v571, %v567
    %v812 = vpack.c.b16 %v572, %v568
    %v813 = vpack.c.b16 %v573, %v569
    %v814 = vpack.c.b16 %v574, %v570
    %v815 = vpack.c.b16 %v579, %v575
    %v816 = vpack.c.b16 %v580, %v576
    %v817 = vpack.c.b16 %v581, %v577
    %v818 = vpack.c.b16 %v582, %v578
    %v819 = vpack.c.b16 %v587, %v583
    %v820 = vpack.c.b16 %v588, %v584
    %v821 = vpack.c.b16 %v589, %v585
    %v822 = vpack.c.b16 %v590, %v586
    %v823 = vpack.c.b16 %v595, %v591
    %v824 = vpack.c.b16 %v596, %v592
    %v825 = vpack.c.b16 %v597, %v593
    %v826 = vpack.c.b16 %v598, %v594
    %v827 = vpack.c.b16 %v603, %v599
    %v828 = vpack.c.b16 %v604, %v600
    %v829 = vpack.c.b16 %v605, %v601
    %v830 = vpack.c.b16 %v606, %v602
    %v831 = vpack.c.b16 %v611, %v607
    %v832 = vpack.c.b16 %v612, %v608
    %v833 = vpack.c.b16 %v613, %v609
    %v834 = vpack.c.b16 %v614, %v610
    %v835 = vpack.c.b16 %v619, %v615
    %v836 = vpack.c.b16 %v620, %v616
    %v837 = vpack.c.b16 %v621, %v617
    %v838 = vpack.c.b16 %v622, %v618
    %v839 = vpack.c.b16 %v627, %v623
    %v840 = vpack.c.b16 %v628, %v624
    %v841 = vpack.c.b16 %v629, %v625
    %v842 = vpack.c.b16 %v630, %v626
    %v843 = vpack.c.b16 %v635, %v631
    %v844 = vpack.c.b16 %v636, %v632
    %v845 = vpack.c.b16 %v637, %v633
    %v846 = vpack.c.b16 %v638, %v634
    %v847 = vpack.c.b16 %v643, %v639
    %v848 = vpack.c.b16 %v644, %v640
    %v849 = vpack.c.b16 %v645, %v641
    %v850 = vpack.c.b16 %v646, %v642
    %v851 = vpack.c.b16 %v651, %v647
    %v852 = vpack.c.b16 %v652, %v648
    %v853 = vpack.c.b16 %v653, %v649
    %v854 = vpack.c.b16 %v654, %v650
    %v855 = vpack.c.b16 %v659, %v655
    %v856 = vpack.c.b16 %v660, %v656
    %v857 = vpack.c.b16 %v661, %v657
    %v858 = vpack.c.b16 %v662, %v658
    %v859 = vpack.c.b16 %v667, %v663
    %v860 = vpack.c.b16 %v668, %v664
    %v861 = vpack.c.b16 %v669, %v665
    %v862 = vpack.c.b16 %v670, %v666
    %v863 = vpack.c.b16 %v675, %v671
    %v864 = vpack.c.b16 %v676, %v672
    %v865 = vpack.c.b16 %v677, %v673
    %v866 = vpack.c.b16 %v678, %v674
    %v867 = vpack.c.b16 %v683, %v679
    %v868 = vpack.c.b16 %v684, %v680
    %v869 = vpack.c.b16 %v685, %v681
    %v870 = vpack.c.b16 %v686, %v682
    %v871 = vpack.c.b16 %v691, %v687
    %v872 = vpack.c.b16 %v692, %v688
    %v873 = vpack.c.b16 %v693, %v689
    %v874 = vpack.c.b16 %v694, %v690
    %v875 = vpack.c.b16 %v699, %v695
    %v876 = vpack.c.b16 %v700, %v696
    %v877 = vpack.c.b16 %v701, %v697
    %v878 = vpack.c.b16 %v702, %v698
    %v879 = vpack.c.b16 %v707, %v703
    %v880 = vpack.c.b16 %v708, %v704
    %v881 = vpack.c.b16 %v709, %v705
    %v882 = vpack.c.b16 %v710, %v706
    %v883 = vpack.c.b16 %v715, %v711
    %v884 = vpack.c.b16 %v716, %v712
    %v885 = vpack.c.b16 %v717, %v713
    %v886 = vpack.c.b16 %v718, %v714
    %v887 = vpack.c.b16 %v723, %v719
    %v888 = vpack.c.b16 %v724, %v720
    %v889 = vpack.c.b16 %v725, %v721
    %v890 = vpack.c.b16 %v726, %v722
    %v891 = vpack.c.b16 %v731, %v727
    %v892 = vpack.c.b16 %v732, %v728
    %v893 = vpack.c.b16 %v733, %v729
    %v894 = vpack.c.b16 %v734, %v730
    %v895 = vpack.c.b16 %v739, %v735
    %v896 = vpack.c.b16 %v740, %v736
    %v897 = vpack.c.b16 %v741, %v737
    %v898 = vpack.c.b16 %v742, %v738
    %v899 = vpack.c.b16 %v747, %v743
    %v900 = vpack.c.b16 %v748, %v744
    %v901 = vpack.c.b16 %v749, %v745
    %v902 = vpack.c.b16 %v750, %v746
    %v903 = vpack.c.b16 %v755, %v751
    %v904 = vpack.c.b16 %v756, %v752
    %v905 = vpack.c.b16 %v757, %v753
    %v906 = vpack.c.b16 %v758, %v754
    %v907 = vpack.c.b16 %v763, %v759
    %v908 = vpack.c.b16 %v764, %v760
    %v909 = vpack.c.b16 %v765, %v761
    %v910 = vpack.c.b16 %v766, %v762
    %v911 = vpack.c.b16 %v771, %v767
    %v912 = vpack.c.b16 %v772, %v768
    %v913 = vpack.c.b16 %v773, %v769
    %v914 = vpack.c.b16 %v774, %v770
    %v915 = vpack.c.b16 %v779, %v775
    %v916 = vpack.c.b16 %v780, %v776
    %v917 = vpack.c.b16 %v781, %v777
    %v918 = vpack.c.b16 %v782, %v778
    %v919 = vpack.c.b16 %v787, %v783
    %v920 = vpack.c.b16 %v788, %v784
    %v921 = vpack.c.b16 %v789, %v785
    %v922 = vpack.c.b16 %v790, %v786
    %v923 = vpack.c.b16 %v795, %v791
    %v924 = vpack.c.b16 %v796, %v792
    %v925 = vpack.c.b16 %v797, %v793
    %v926 = vpack.c.b16 %v798, %v794
    %1055 = vmatprep.subr.bf16.mxu0 %v800
    %1056 = vmatpush1.bf16.msra.mxu0 %v799
    %1057 = vmatprep.subr.bf16.mxu0 %v804
    %1058 = vmatpush1.bf16.msra.mxu0 %v803
    %1059 = vmatprep.subr.bf16.mxu0 %v808
    %1060 = vmatpush1.bf16.msra.mxu0 %v807
    %1061 = vmatprep.subr.bf16.mxu0 %v812
    %1062 = vmatpush1.bf16.msra.mxu0 %v811
    %1063 = vmatprep.subr.bf16.mxu0 %v816
    %1064 = vmatpush1.bf16.msra.mxu0 %v815
    %1065 = vmatprep.subr.bf16.mxu0 %v820
    %1066 = vmatpush1.bf16.msra.mxu0 %v819
    %1067 = vmatprep.subr.bf16.mxu0 %v824
    %1068 = vmatpush1.bf16.msra.mxu0 %v823
    %1069 = vmatprep.subr.bf16.mxu0 %v828
    %1070 = vmatpush1.bf16.msra.mxu0 %v827
    %1071 = vmatprep.subr.bf16.mxu0 %v832
    %1072 = vmatpush1.bf16.msra.mxu0 %v831
    %1073 = vmatprep.subr.bf16.mxu0 %v836
    %1074 = vmatpush1.bf16.msra.mxu0 %v835
    %1075 = vmatprep.subr.bf16.mxu0 %v840
    %1076 = vmatpush1.bf16.msra.mxu0 %v839
    %1077 = vmatprep.subr.bf16.mxu0 %v844
    %1078 = vmatpush1.bf16.msra.mxu0 %v843
    %1079 = vmatprep.subr.bf16.mxu0 %v848
    %1080 = vmatpush1.bf16.msra.mxu0 %v847
    %1081 = vmatprep.subr.bf16.mxu0 %v852
    %1082 = vmatpush1.bf16.msra.mxu0 %v851
    %1083 = vmatprep.subr.bf16.mxu0 %v856
    %1084 = vmatpush1.bf16.msra.mxu0 %v855
    %1085 = vmatprep.subr.bf16.mxu0 %v860
    %1086 = vmatpush1.bf16.msra.mxu0 %v859
    %1087 = vmatprep.mubr.bf16.mxu0 %v263
    %1088 = vmatmul.mubr.bf16.gmra.mrb[0].mxu0 %v262
    %v1089 = vpop.f32.mrb[0].mxu0
    %v1090 = vadd.f32 %v398, %v1089
    %v1091 = vpop.f32.mrb[0].mxu0
    %v1092 = vadd.f32 %v402, %v1091
    %v1093 = vpop.f32.mrb[0].mxu0
    %v1094 = vadd.f32 %v398, %v1093
    %v1095 = vpop.f32.mrb[0].mxu0
    %v1096 = vadd.f32 %v402, %v1095
    %1097 = vdwg.mxu0
    %1098 = vmatprep.subr.bf16.mxu0 %v864
    %1099 = vmatpush1.bf16.msra.mxu0 %v863
    %1100 = vmatprep.subr.bf16.mxu0 %v868
    %1101 = vmatpush1.bf16.msra.mxu0 %v867
    %1102 = vmatprep.subr.bf16.mxu0 %v872
    %1103 = vmatpush1.bf16.msra.mxu0 %v871
    %1104 = vmatprep.subr.bf16.mxu0 %v876
    %1105 = vmatpush1.bf16.msra.mxu0 %v875
    %1106 = vmatprep.subr.bf16.mxu0 %v880
    %1107 = vmatpush1.bf16.msra.mxu0 %v879
    %1108 = vmatprep.subr.bf16.mxu0 %v884
    %1109 = vmatpush1.bf16.msra.mxu0 %v883
    %1110 = vmatprep.subr.bf16.mxu0 %v888
    %1111 = vmatpush1.bf16.msra.mxu0 %v887
    %1112 = vmatprep.subr.bf16.mxu0 %v892
    %1113 = vmatpush1.bf16.msra.mxu0 %v891
    %1114 = vmatprep.subr.bf16.mxu0 %v896
    %1115 = vmatpush1.bf16.msra.mxu0 %v895
    %1116 = vmatprep.subr.bf16.mxu0 %v900
    %1117 = vmatpush1.bf16.msra.mxu0 %v899
    %1118 = vmatprep.subr.bf16.mxu0 %v904
    %1119 = vmatpush1.bf16.msra.mxu0 %v903
    %1120 = vmatprep.subr.bf16.mxu0 %v908
    %1121 = vmatpush1.bf16.msra.mxu0 %v907
    %1122 = vmatprep.subr.bf16.mxu0 %v912
    %1123 = vmatpush1.bf16.msra.mxu0 %v911
    %1124 = vmatprep.subr.bf16.mxu0 %v916
    %1125 = vmatpush1.bf16.msra.mxu0 %v915
    %1126 = vmatprep.subr.bf16.mxu0 %v920
    %1127 = vmatpush1.bf16.msra.mxu0 %v919
    %1128 = vmatprep.subr.bf16.mxu0 %v924
    %1129 = vmatpush1.bf16.msra.mxu0 %v923
    %1130 = vmatprep.mubr.bf16.mxu0 %v265
    %1131 = vmatmul.mubr.bf16.gmra.mrb[0].mxu0 %v264
    %v1132 = vpop.f32.mrb[0].mxu0
    %v1133 = vadd.f32 %v1090, %v1132
    %v1134 = vpop.f32.mrb[0].mxu0
    %v1135 = vadd.f32 %v1092, %v1134
    %v1136 = vpop.f32.mrb[0].mxu0
    %v1137 = vadd.f32 %v1094, %v1136
    %v1138 = vpop.f32.mrb[0].mxu0
    %v1139 = vadd.f32 %v1096, %v1138
    %1140 = vdwg.mxu0
    %1141 = vmatprep.subr.bf16.mxu0 %v802
    %1142 = vmatpush1.bf16.msra.mxu0 %v801
    %1143 = vmatprep.subr.bf16.mxu0 %v806
    %1144 = vmatpush1.bf16.msra.mxu0 %v805
    %1145 = vmatprep.subr.bf16.mxu0 %v810
    %1146 = vmatpush1.bf16.msra.mxu0 %v809
    %1147 = vmatprep.subr.bf16.mxu0 %v814
    %1148 = vmatpush1.bf16.msra.mxu0 %v813
    %1149 = vmatprep.subr.bf16.mxu0 %v818
    %1150 = vmatpush1.bf16.msra.mxu0 %v817
    %1151 = vmatprep.subr.bf16.mxu0 %v822
    %1152 = vmatpush1.bf16.msra.mxu0 %v821
    %1153 = vmatprep.subr.bf16.mxu0 %v826
    %1154 = vmatpush1.bf16.msra.mxu0 %v825
    %1155 = vmatprep.subr.bf16.mxu0 %v830
    %1156 = vmatpush1.bf16.msra.mxu0 %v829
    %1157 = vmatprep.subr.bf16.mxu0 %v834
    %1158 = vmatpush1.bf16.msra.mxu0 %v833
    %1159 = vmatprep.subr.bf16.mxu0 %v838
    %1160 = vmatpush1.bf16.msra.mxu0 %v837
    %1161 = vmatprep.subr.bf16.mxu0 %v842
    %1162 = vmatpush1.bf16.msra.mxu0 %v841
    %1163 = vmatprep.subr.bf16.mxu0 %v846
    %1164 = vmatpush1.bf16.msra.mxu0 %v845
    %1165 = vmatprep.subr.bf16.mxu0 %v850
    %1166 = vmatpush1.bf16.msra.mxu0 %v849
    %1167 = vmatprep.subr.bf16.mxu0 %v854
    %1168 = vmatpush1.bf16.msra.mxu0 %v853
    %1169 = vmatprep.subr.bf16.mxu0 %v858
    %1170 = vmatpush1.bf16.msra.mxu0 %v857
    %1171 = vmatprep.subr.bf16.mxu0 %v862
    %1172 = vmatpush1.bf16.msra.mxu0 %v861
    %1173 = vmatprep.mubr.bf16.mxu0 %v263
    %1174 = vmatmul.mubr.bf16.gmra.mrb[0].mxu0 %v262
    %v1175 = vpop.f32.mrb[0].mxu0
    %v1176 = vadd.f32 %v406, %v1175
    %v1177 = vpop.f32.mrb[0].mxu0
    %v1178 = vadd.f32 %v410, %v1177
    %v1179 = vpop.f32.mrb[0].mxu0
    %v1180 = vadd.f32 %v406, %v1179
    %v1181 = vpop.f32.mrb[0].mxu0
    %v1182 = vadd.f32 %v410, %v1181
    %1183 = vdwg.mxu0
    %1184 = vmatprep.subr.bf16.mxu0 %v866
    %1185 = vmatpush1.bf16.msra.mxu0 %v865
    %1186 = vmatprep.subr.bf16.mxu0 %v870
    %1187 = vmatpush1.bf16.msra.mxu0 %v869
    %1188 = vmatprep.subr.bf16.mxu0 %v874
    %1189 = vmatpush1.bf16.msra.mxu0 %v873
    %1190 = vmatprep.subr.bf16.mxu0 %v878
    %1191 = vmatpush1.bf16.msra.mxu0 %v877
    %1192 = vmatprep.subr.bf16.mxu0 %v882
    %1193 = vmatpush1.bf16.msra.mxu0 %v881
    %1194 = vmatprep.subr.bf16.mxu0 %v886
    %1195 = vmatpush1.bf16.msra.mxu0 %v885
    %1196 = vmatprep.subr.bf16.mxu0 %v890
    %1197 = vmatpush1.bf16.msra.mxu0 %v889
    %1198 = vmatprep.subr.bf16.mxu0 %v894
    %1199 = vmatpush1.bf16.msra.mxu0 %v893
    %1200 = vmatprep.subr.bf16.mxu0 %v898
    %1201 = vmatpush1.bf16.msra.mxu0 %v897
    %1202 = vmatprep.subr.bf16.mxu0 %v902
    %1203 = vmatpush1.bf16.msra.mxu0 %v901
    %1204 = vmatprep.subr.bf16.mxu0 %v906
    %1205 = vmatpush1.bf16.msra.mxu0 %v905
    %1206 = vmatprep.subr.bf16.mxu0 %v910
    %1207 = vmatpush1.bf16.msra.mxu0 %v909
    %1208 = vmatprep.subr.bf16.mxu0 %v914
    %1209 = vmatpush1.bf16.msra.mxu0 %v913
    %1210 = vmatprep.subr.bf16.mxu0 %v918
    %1211 = vmatpush1.bf16.msra.mxu0 %v917
    %1212 = vmatprep.subr.bf16.mxu0 %v922
    %1213 = vmatpush1.bf16.msra.mxu0 %v921
    %1214 = vmatprep.subr.bf16.mxu0 %v926
    %1215 = vmatpush1.bf16.msra.mxu0 %v925
    %1216 = vmatprep.mubr.bf16.mxu0 %v265
    %1217 = vmatmul.mubr.bf16.gmra.mrb[0].mxu0 %v264
    %v1218 = vpop.f32.mrb[0].mxu0
    %v1219 = vadd.f32 %v1176, %v1218
    %v1220 = vpop.f32.mrb[0].mxu0
    %v1221 = vadd.f32 %v1178, %v1220
    %v1222 = vpop.f32.mrb[0].mxu0
    %v1223 = vadd.f32 %v1180, %v1222
    %v1224 = vpop.f32.mrb[0].mxu0
    %v1225 = vadd.f32 %v1182, %v1224
    %1226 = vdwg.mxu0
    %vm1227 = vcmp.ge.f32.partialorder %v1133, 0.0
    %vm1228 = vcmp.ge.f32.partialorder %v1135, 0.0
    %vm1229 = vcmp.ge.f32.partialorder %v1219, 0.0
    %vm1230 = vcmp.ge.f32.partialorder %v1221, 0.0
    %vm1231 = vcmp.ge.f32.partialorder %v1137, 0.0
    %vm1232 = vcmp.ge.f32.partialorder %v1139, 0.0
    %vm1233 = vcmp.ge.f32.partialorder %v1223, 0.0
    %vm1234 = vcmp.ge.f32.partialorder %v1225, 0.0
    %v1235 = vmul.f32 %v1133, 0.01
    %v1236 = vmul.f32 %v1135, 0.01
    %v1237 = vmul.f32 %v1219, 0.01
    %v1238 = vmul.f32 %v1221, 0.01
    %v1239 = vmul.f32 %v1137, 0.01
    %v1240 = vmul.f32 %v1139, 0.01
    %v1241 = vmul.f32 %v1223, 0.01
    %v1242 = vmul.f32 %v1225, 0.01
    %v1243 = vsel %vm1227, %v1133, %v1235
    %v1244 = vsel %vm1228, %v1135, %v1236
    %v1245 = vsel %vm1229, %v1219, %v1237
    %v1246 = vsel %vm1230, %v1221, %v1238
    %v1247 = vsel %vm1231, %v1137, %v1239
    %v1248 = vsel %vm1232, %v1139, %v1240
    %v1249 = vsel %vm1233, %v1223, %v1241
    %v1250 = vsel %vm1234, %v1225, %v1242
    %v1251 = vsub.f32 %v1243, %v1247
    %v1252 = vsub.f32 %v1244, %v1248
    %v1253 = vsub.f32 %v1245, %v1249
    %v1254 = vsub.f32 %v1246, %v1250
    %v1255 = vand.u32 2147483647, %v1251
    %v1256 = vand.u32 2147483647, %v1252
    %v1257 = vand.u32 2147483647, %v1253
    %v1258 = vand.u32 2147483647, %v1254
    %v1260 = vlaneseq
    %v1261 = vshrl.u32 %v1260, 7
    %v1262 = vsub.s32 0, %v1261
    %v1263 = vrot.slane %v39, %v1262
    %v1264 = vlaneseq
    %v1265 = vshrl.u32 %v1264, 7
    %v1266 = vsub.s32 1, %v1265
    %v1267 = vrot.slane %v39, %v1266
    %v1268 = vlaneseq
    %v1269 = vshrl.u32 %v1268, 7
    %v1270 = vsub.s32 2, %v1269
    %v1271 = vrot.slane %v39, %v1270
    %v1272 = vlaneseq
    %v1273 = vshrl.u32 %v1272, 7
    %v1274 = vsub.s32 3, %v1273
    %v1275 = vrot.slane %v39, %v1274
    %v1280 = vmul.f32 %v1255, %v1263
    %v1281 = vmul.f32 %v1256, %v1267
    %v1282 = vmul.f32 %v1257, %v1271
    %v1283 = vmul.f32 %v1258, %v1275
    %v1285 = vlaneseq
    %v1286 = vshrl.u32 %v1285, 7
    %v1287 = vsub.s32 0, %v1286
    %v1288 = vrot.slane %v41, %v1287
    %v1289 = vlaneseq
    %v1290 = vshrl.u32 %v1289, 7
    %v1291 = vsub.s32 1, %v1290
    %v1292 = vrot.slane %v41, %v1291
    %v1293 = vlaneseq
    %v1294 = vshrl.u32 %v1293, 7
    %v1295 = vsub.s32 2, %v1294
    %v1296 = vrot.slane %v41, %v1295
    %v1297 = vlaneseq
    %v1298 = vshrl.u32 %v1297, 7
    %v1299 = vsub.s32 3, %v1298
    %v1300 = vrot.slane %v41, %v1299
    %v1305 = vadd.f32 %v1280, %v1288
    %v1306 = vadd.f32 %v1281, %v1292
    %v1307 = vadd.f32 %v1282, %v1296
    %v1308 = vadd.f32 %v1283, %v1300
    %vm1309 = vcmp.ge.f32.partialorder %v1305, 0.0
    %vm1310 = vcmp.ge.f32.partialorder %v1306, 0.0
    %vm1311 = vcmp.ge.f32.partialorder %v1307, 0.0
    %vm1312 = vcmp.ge.f32.partialorder %v1308, 0.0
    %v1313 = vmul.f32 %v1305, 0.01
    %v1314 = vmul.f32 %v1306, 0.01
    %v1315 = vmul.f32 %v1307, 0.01
    %v1316 = vmul.f32 %v1308, 0.01
    %v1317 = vsel %vm1309, %v1305, %v1313
    %v1318 = vsel %vm1310, %v1306, %v1314
    %v1319 = vsel %vm1311, %v1307, %v1315
    %v1320 = vsel %vm1312, %v1308, %v1316
    %v1321 = vld [vmem:[%s6] sm:$0xff]
    %v1322 = vld [vmem:[%s6 + $0x8] sm:$0xff]
    %v1323 = vld [vmem:[%s6 + $0x10] sm:$0xff]
    %v1324 = vld [vmem:[%s6 + $0x18] sm:$0xff]
    %v1325 = vld [vmem:[%s6 + $0x20] sm:$0xff]
    %v1326 = vld [vmem:[%s6 + $0x28] sm:$0xff]
    %v1327 = vld [vmem:[%s6 + $0x30] sm:$0xff]
    %v1328 = vld [vmem:[%s6 + $0x38] sm:$0xff]
    %v1329 = vld [vmem:[%s6 + $0x40] sm:$0xff]
    %v1330 = vld [vmem:[%s6 + $0x48] sm:$0xff]
    %v1331 = vld [vmem:[%s6 + $0x50] sm:$0xff]
    %v1332 = vld [vmem:[%s6 + $0x58] sm:$0xff]
    %v1333 = vld [vmem:[%s6 + $0x60] sm:$0xff]
    %v1334 = vld [vmem:[%s6 + $0x68] sm:$0xff]
    %v1335 = vld [vmem:[%s6 + $0x70] sm:$0xff]
    %v1336 = vld [vmem:[%s6 + $0x78] sm:$0xff]
    %v1337 = vld [vmem:[%s6 + $0x80] sm:$0xff]
    %v1338 = vld [vmem:[%s6 + $0x88] sm:$0xff]
    %v1339 = vld [vmem:[%s6 + $0x90] sm:$0xff]
    %v1340 = vld [vmem:[%s6 + $0x98] sm:$0xff]
    %v1341 = vld [vmem:[%s6 + $0xa0] sm:$0xff]
    %v1342 = vld [vmem:[%s6 + $0xa8] sm:$0xff]
    %v1343 = vld [vmem:[%s6 + $0xb0] sm:$0xff]
    %v1344 = vld [vmem:[%s6 + $0xb8] sm:$0xff]
    %v1345 = vld [vmem:[%s6 + $0xc0] sm:$0xff]
    %v1346 = vld [vmem:[%s6 + $0xc8] sm:$0xff]
    %v1347 = vld [vmem:[%s6 + $0xd0] sm:$0xff]
    %v1348 = vld [vmem:[%s6 + $0xd8] sm:$0xff]
    %v1349 = vld [vmem:[%s6 + $0xe0] sm:$0xff]
    %v1350 = vld [vmem:[%s6 + $0xe8] sm:$0xff]
    %v1351 = vld [vmem:[%s6 + $0xf0] sm:$0xff]
    %v1352 = vld [vmem:[%s6 + $0xf8] sm:$0xff]
    %v1353 = vld [vmem:[%s6 + $0x100] sm:$0xff]
    %v1354 = vld [vmem:[%s6 + $0x108] sm:$0xff]
    %v1355 = vld [vmem:[%s6 + $0x110] sm:$0xff]
    %v1356 = vld [vmem:[%s6 + $0x118] sm:$0xff]
    %v1357 = vld [vmem:[%s6 + $0x120] sm:$0xff]
    %v1358 = vld [vmem:[%s6 + $0x128] sm:$0xff]
    %v1359 = vld [vmem:[%s6 + $0x130] sm:$0xff]
    %v1360 = vld [vmem:[%s6 + $0x138] sm:$0xff]
    %v1361 = vld [vmem:[%s6 + $0x140] sm:$0xff]
    %v1362 = vld [vmem:[%s6 + $0x148] sm:$0xff]
    %v1363 = vld [vmem:[%s6 + $0x150] sm:$0xff]
    %v1364 = vld [vmem:[%s6 + $0x158] sm:$0xff]
    %v1365 = vld [vmem:[%s6 + $0x160] sm:$0xff]
    %v1366 = vld [vmem:[%s6 + $0x168] sm:$0xff]
    %v1367 = vld [vmem:[%s6 + $0x170] sm:$0xff]
    %v1368 = vld [vmem:[%s6 + $0x178] sm:$0xff]
    %v1369 = vld [vmem:[%s6 + $0x180] sm:$0xff]
    %v1370 = vld [vmem:[%s6 + $0x188] sm:$0xff]
    %v1371 = vld [vmem:[%s6 + $0x190] sm:$0xff]
    %v1372 = vld [vmem:[%s6 + $0x198] sm:$0xff]
    %v1373 = vld [vmem:[%s6 + $0x1a0] sm:$0xff]
    %v1374 = vld [vmem:[%s6 + $0x1a8] sm:$0xff]
    %v1375 = vld [vmem:[%s6 + $0x1b0] sm:$0xff]
    %v1376 = vld [vmem:[%s6 + $0x1b8] sm:$0xff]
    %v1377 = vld [vmem:[%s6 + $0x1c0] sm:$0xff]
    %v1378 = vld [vmem:[%s6 + $0x1c8] sm:$0xff]
    %v1379 = vld [vmem:[%s6 + $0x1d0] sm:$0xff]
    %v1380 = vld [vmem:[%s6 + $0x1d8] sm:$0xff]
    %v1381 = vld [vmem:[%s6 + $0x1e0] sm:$0xff]
    %v1382 = vld [vmem:[%s6 + $0x1e8] sm:$0xff]
    %v1383 = vld [vmem:[%s6 + $0x1f0] sm:$0xff]
    %v1384 = vld [vmem:[%s6 + $0x1f8] sm:$0xff]
    %v1385 = vlaneseq
    %v1386 = vshrl.u32 %v1385, 7
    %v1387 = vsub.s32 0, %v1386
    %v1388 = vrot.slane %v46, %v1387
    %1389 = vmatprep.subr.mxu0 0.0
    %1390 = vmatpush1.msra.mxu0 %v1321
    %1391 = vmatprep.subr.mxu0 0.0
    %1392 = vmatpush1.msra.mxu0 %v1322
    %1393 = vmatprep.subr.mxu0 0.0
    %1394 = vmatpush1.msra.mxu0 %v1323
    %1395 = vmatprep.subr.mxu0 0.0
    %1396 = vmatpush1.msra.mxu0 %v1324
    %1397 = vmatprep.subr.mxu0 0.0
    %1398 = vmatpush1.msra.mxu0 %v1325
    %1399 = vmatprep.subr.mxu0 0.0
    %1400 = vmatpush1.msra.mxu0 %v1326
    %1401 = vmatprep.subr.mxu0 0.0
    %1402 = vmatpush1.msra.mxu0 %v1327
    %1403 = vmatprep.subr.mxu0 0.0
    %1404 = vmatpush1.msra.mxu0 %v1328
    %1405 = vmatprep.subr.mxu0 0.0
    %1406 = vmatpush1.msra.mxu0 %v1329
    %1407 = vmatprep.subr.mxu0 0.0
    %1408 = vmatpush1.msra.mxu0 %v1330
    %1409 = vmatprep.subr.mxu0 0.0
    %1410 = vmatpush1.msra.mxu0 %v1331
    %1411 = vmatprep.subr.mxu0 0.0
    %1412 = vmatpush1.msra.mxu0 %v1332
    %1413 = vmatprep.subr.mxu0 0.0
    %1414 = vmatpush1.msra.mxu0 %v1333
    %1415 = vmatprep.subr.mxu0 0.0
    %1416 = vmatpush1.msra.mxu0 %v1334
    %1417 = vmatprep.subr.mxu0 0.0
    %1418 = vmatpush1.msra.mxu0 %v1335
    %1419 = vmatprep.subr.mxu0 0.0
    %1420 = vmatpush1.msra.mxu0 %v1336
    %1421 = vmatprep.subr.mxu0 0.0
    %1422 = vmatpush1.msra.mxu0 %v1337
    %1423 = vmatprep.subr.mxu0 0.0
    %1424 = vmatpush1.msra.mxu0 %v1338
    %1425 = vmatprep.subr.mxu0 0.0
    %1426 = vmatpush1.msra.mxu0 %v1339
    %1427 = vmatprep.subr.mxu0 0.0
    %1428 = vmatpush1.msra.mxu0 %v1340
    %1429 = vmatprep.subr.mxu0 0.0
    %1430 = vmatpush1.msra.mxu0 %v1341
    %1431 = vmatprep.subr.mxu0 0.0
    %1432 = vmatpush1.msra.mxu0 %v1342
    %1433 = vmatprep.subr.mxu0 0.0
    %1434 = vmatpush1.msra.mxu0 %v1343
    %1435 = vmatprep.subr.mxu0 0.0
    %1436 = vmatpush1.msra.mxu0 %v1344
    %1437 = vmatprep.subr.mxu0 0.0
    %1438 = vmatpush1.msra.mxu0 %v1345
    %1439 = vmatprep.subr.mxu0 0.0
    %1440 = vmatpush1.msra.mxu0 %v1346
    %1441 = vmatprep.subr.mxu0 0.0
    %1442 = vmatpush1.msra.mxu0 %v1347
    %1443 = vmatprep.subr.mxu0 0.0
    %1444 = vmatpush1.msra.mxu0 %v1348
    %1445 = vmatprep.subr.mxu0 0.0
    %1446 = vmatpush1.msra.mxu0 %v1349
    %1447 = vmatprep.subr.mxu0 0.0
    %1448 = vmatpush1.msra.mxu0 %v1350
    %1449 = vmatprep.subr.mxu0 0.0
    %1450 = vmatpush1.msra.mxu0 %v1351
    %1451 = vmatprep.subr.mxu0 0.0
    %1452 = vmatpush1.msra.mxu0 %v1352
    %1453 = vmatprep.mubr.f32.mxu0 %v1318
    %1454 = vmatmul.mubr.f32.gmra.mrb[0].mxu0 %v1317
    %v1455 = vpop.f32.mrb[0].mxu0
    %v1456 = vadd.f32 %v1388, %v1455
    %v1457 = vpop.f32.mrb[0].mxu0
    %1458 = vdwg.mxu0
    %1459 = vmatprep.subr.mxu0 0.0
    %1460 = vmatpush1.msra.mxu0 %v1353
    %1461 = vmatprep.subr.mxu0 0.0
    %1462 = vmatpush1.msra.mxu0 %v1354
    %1463 = vmatprep.subr.mxu0 0.0
    %1464 = vmatpush1.msra.mxu0 %v1355
    %1465 = vmatprep.subr.mxu0 0.0
    %1466 = vmatpush1.msra.mxu0 %v1356
    %1467 = vmatprep.subr.mxu0 0.0
    %1468 = vmatpush1.msra.mxu0 %v1357
    %1469 = vmatprep.subr.mxu0 0.0
    %1470 = vmatpush1.msra.mxu0 %v1358
    %1471 = vmatprep.subr.mxu0 0.0
    %1472 = vmatpush1.msra.mxu0 %v1359
    %1473 = vmatprep.subr.mxu0 0.0
    %1474 = vmatpush1.msra.mxu0 %v1360
    %1475 = vmatprep.subr.mxu0 0.0
    %1476 = vmatpush1.msra.mxu0 %v1361
    %1477 = vmatprep.subr.mxu0 0.0
    %1478 = vmatpush1.msra.mxu0 %v1362
    %1479 = vmatprep.subr.mxu0 0.0
    %1480 = vmatpush1.msra.mxu0 %v1363
    %1481 = vmatprep.subr.mxu0 0.0
    %1482 = vmatpush1.msra.mxu0 %v1364
    %1483 = vmatprep.subr.mxu0 0.0
    %1484 = vmatpush1.msra.mxu0 %v1365
    %1485 = vmatprep.subr.mxu0 0.0
    %1486 = vmatpush1.msra.mxu0 %v1366
    %1487 = vmatprep.subr.mxu0 0.0
    %1488 = vmatpush1.msra.mxu0 %v1367
    %1489 = vmatprep.subr.mxu0 0.0
    %1490 = vmatpush1.msra.mxu0 %v1368
    %1491 = vmatprep.subr.mxu0 0.0
    %1492 = vmatpush1.msra.mxu0 %v1369
    %1493 = vmatprep.subr.mxu0 0.0
    %1494 = vmatpush1.msra.mxu0 %v1370
    %1495 = vmatprep.subr.mxu0 0.0
    %1496 = vmatpush1.msra.mxu0 %v1371
    %1497 = vmatprep.subr.mxu0 0.0
    %1498 = vmatpush1.msra.mxu0 %v1372
    %1499 = vmatprep.subr.mxu0 0.0
    %1500 = vmatpush1.msra.mxu0 %v1373
    %1501 = vmatprep.subr.mxu0 0.0
    %1502 = vmatpush1.msra.mxu0 %v1374
    %1503 = vmatprep.subr.mxu0 0.0
    %1504 = vmatpush1.msra.mxu0 %v1375
    %1505 = vmatprep.subr.mxu0 0.0
    %1506 = vmatpush1.msra.mxu0 %v1376
    %1507 = vmatprep.subr.mxu0 0.0
    %1508 = vmatpush1.msra.mxu0 %v1377
    %1509 = vmatprep.subr.mxu0 0.0
    %1510 = vmatpush1.msra.mxu0 %v1378
    %1511 = vmatprep.subr.mxu0 0.0
    %1512 = vmatpush1.msra.mxu0 %v1379
    %1513 = vmatprep.subr.mxu0 0.0
    %1514 = vmatpush1.msra.mxu0 %v1380
    %1515 = vmatprep.subr.mxu0 0.0
    %1516 = vmatpush1.msra.mxu0 %v1381
    %1517 = vmatprep.subr.mxu0 0.0
    %1518 = vmatpush1.msra.mxu0 %v1382
    %1519 = vmatprep.subr.mxu0 0.0
    %1520 = vmatpush1.msra.mxu0 %v1383
    %1521 = vmatprep.subr.mxu0 0.0
    %1522 = vmatpush1.msra.mxu0 %v1384
    %1523 = vmatprep.mubr.f32.mxu0 %v1320
    %1524 = vmatmul.mubr.f32.gmra.mrb[0].mxu0 %v1319
    %v1525 = vpop.f32.mrb[0].mxu0
    %v1526 = vadd.f32 %v1456, %v1525
    %v1527 = vpop.f32.mrb[0].mxu0
    %1528 = vdwg.mxu0
    %vm1529 = vcmp.ge.f32.partialorder %v1526, 0.0
    %v1530 = vmul.f32 %v1526, 0.01
    %v1531 = vsel %vm1529, %v1526, %v1530
    %v1532 = vld [vmem:[%s1] sm:$0xff]
    %v1533 = vld [vmem:[%s4] sm:$0x77]
    %v1534 = vld [vmem:[%s4 + $0x8] sm:$0x77]
    %v1536 = vlaneseq
    %v1537 = vshrl.u32 %v1536, 7
    %v1538 = vsub.s32 0, %v1537
    %v1539 = vrot.slane %v43, %v1538
    %v1540 = vlaneseq
    %v1541 = vshrl.u32 %v1540, 7
    %v1542 = vsub.s32 1, %v1541
    %v1543 = vrot.slane %v43, %v1542
    %v1544 = vlaneseq
    %v1545 = vshrl.u32 %v1544, 7
    %v1546 = vsub.s32 2, %v1545
    %v1547 = vrot.slane %v43, %v1546
    %v1548 = vlaneseq
    %v1549 = vshrl.u32 %v1548, 7
    %v1550 = vsub.s32 3, %v1549
    %v1551 = vrot.slane %v43, %v1550
    %v1558 = vcombine.high %v1533, %v1533
    %v1559 = vcombine.high %v1534, %v1534
    %vm1560 = vcmask 23552
    %v1562 = vsel %vm1560, %v1532, 0
    %vm1564 = vcmask 1042432
    %v1565 = vsel %vm1564, %v1533, 0
    %v1567 = vsel %vm1564, %v1558, 0
    %v1569 = vsel %vm1564, %v1534, 0
    %v1571 = vsel %vm1564, %v1559, 0
    %1573 = vmatprep.subr.mxu0 %v1567
    %1574 = vmatpush1.msra.mxu0 %v1565
    %1575 = vmatprep.subr.mxu0 0.0
    %1576 = vmatpush1.msra.mxu0 0.0
    %1577 = vmatprep.subr.mxu0 0.0
    %1578 = vmatpush1.msra.mxu0 0.0
    %1579 = vmatprep.subr.mxu0 0.0
    %1580 = vmatpush1.msra.mxu0 0.0
    %1581 = vmatprep.subr.mxu0 0.0
    %1582 = vmatpush1.msra.mxu0 0.0
    %1583 = vmatprep.subr.mxu0 0.0
    %1584 = vmatpush1.msra.mxu0 0.0
    %1585 = vmatprep.subr.mxu0 0.0
    %1586 = vmatpush1.msra.mxu0 0.0
    %1587 = vmatprep.subr.mxu0 0.0
    %1588 = vmatpush1.msra.mxu0 0.0
    %1589 = vmatprep.subr.mxu0 0.0
    %1590 = vmatpush1.msra.mxu0 0.0
    %1591 = vmatprep.subr.mxu0 0.0
    %1592 = vmatpush1.msra.mxu0 0.0
    %1593 = vmatprep.subr.mxu0 0.0
    %1594 = vmatpush1.msra.mxu0 0.0
    %1595 = vmatprep.subr.mxu0 0.0
    %1596 = vmatpush1.msra.mxu0 0.0
    %1597 = vmatprep.subr.mxu0 0.0
    %1598 = vmatpush1.msra.mxu0 0.0
    %1599 = vmatprep.subr.mxu0 0.0
    %1600 = vmatpush1.msra.mxu0 0.0
    %1601 = vmatprep.subr.mxu0 0.0
    %1602 = vmatpush1.msra.mxu0 0.0
    %1603 = vmatprep.subr.mxu0 0.0
    %1604 = vmatpush1.msra.mxu0 0.0
    %1605 = vmatprep.subr.mxu0 0.0
    %1606 = vmatpush1.msra.mxu0 0.0
    %1607 = vmatprep.subr.mxu0 0.0
    %1608 = vmatpush1.msra.mxu0 0.0
    %1609 = vmatprep.subr.mxu0 0.0
    %1610 = vmatpush1.msra.mxu0 0.0
    %1611 = vmatprep.subr.mxu0 0.0
    %1612 = vmatpush1.msra.mxu0 0.0
    %1613 = vmatprep.subr.mxu0 0.0
    %1614 = vmatpush1.msra.mxu0 0.0
    %1615 = vmatprep.subr.mxu0 0.0
    %1616 = vmatpush1.msra.mxu0 0.0
    %1617 = vmatprep.subr.mxu0 0.0
    %1618 = vmatpush1.msra.mxu0 0.0
    %1619 = vmatprep.subr.mxu0 0.0
    %1620 = vmatpush1.msra.mxu0 0.0
    %1621 = vmatprep.subr.mxu0 0.0
    %1622 = vmatpush1.msra.mxu0 0.0
    %1623 = vmatprep.subr.mxu0 0.0
    %1624 = vmatpush1.msra.mxu0 0.0
    %1625 = vmatprep.subr.mxu0 0.0
    %1626 = vmatpush1.msra.mxu0 0.0
    %1627 = vmatprep.subr.mxu0 0.0
    %1628 = vmatpush1.msra.mxu0 0.0
    %1629 = vmatprep.subr.mxu0 0.0
    %1630 = vmatpush1.msra.mxu0 0.0
    %1631 = vmatprep.subr.mxu0 0.0
    %1632 = vmatpush1.msra.mxu0 0.0
    %1633 = vmatprep.subr.mxu0 0.0
    %1634 = vmatpush1.msra.mxu0 0.0
    %1635 = vmatprep.subr.mxu0 0.0
    %1636 = vmatpush1.msra.mxu0 0.0
    %1637 = vmatprep.mubr.f32.mxu0 0.0
    %1638 = vmatmul.mubr.f32.gmra.mrb[0].mxu0 %v1562
    %v1639 = vpop.f32.mrb[0].mxu0
    %v1640 = vadd.f32 %v1539, %v1639
    %v1641 = vpop.f32.mrb[0].mxu0
    %v1642 = vadd.f32 %v1543, %v1641
    %1643 = vdwg.mxu0
    %1644 = vmatprep.subr.mxu0 %v1571
    %1645 = vmatpush1.msra.mxu0 %v1569
    %1646 = vmatprep.subr.mxu0 0.0
    %1647 = vmatpush1.msra.mxu0 0.0
    %1648 = vmatprep.subr.mxu0 0.0
    %1649 = vmatpush1.msra.mxu0 0.0
    %1650 = vmatprep.subr.mxu0 0.0
    %1651 = vmatpush1.msra.mxu0 0.0
    %1652 = vmatprep.subr.mxu0 0.0
    %1653 = vmatpush1.msra.mxu0 0.0
    %1654 = vmatprep.subr.mxu0 0.0
    %1655 = vmatpush1.msra.mxu0 0.0
    %1656 = vmatprep.subr.mxu0 0.0
    %1657 = vmatpush1.msra.mxu0 0.0
    %1658 = vmatprep.subr.mxu0 0.0
    %1659 = vmatpush1.msra.mxu0 0.0
    %1660 = vmatprep.subr.mxu0 0.0
    %1661 = vmatpush1.msra.mxu0 0.0
    %1662 = vmatprep.subr.mxu0 0.0
    %1663 = vmatpush1.msra.mxu0 0.0
    %1664 = vmatprep.subr.mxu0 0.0
    %1665 = vmatpush1.msra.mxu0 0.0
    %1666 = vmatprep.subr.mxu0 0.0
    %1667 = vmatpush1.msra.mxu0 0.0
    %1668 = vmatprep.subr.mxu0 0.0
    %1669 = vmatpush1.msra.mxu0 0.0
    %1670 = vmatprep.subr.mxu0 0.0
    %1671 = vmatpush1.msra.mxu0 0.0
    %1672 = vmatprep.subr.mxu0 0.0
    %1673 = vmatpush1.msra.mxu0 0.0
    %1674 = vmatprep.subr.mxu0 0.0
    %1675 = vmatpush1.msra.mxu0 0.0
    %1676 = vmatprep.subr.mxu0 0.0
    %1677 = vmatpush1.msra.mxu0 0.0
    %1678 = vmatprep.subr.mxu0 0.0
    %1679 = vmatpush1.msra.mxu0 0.0
    %1680 = vmatprep.subr.mxu0 0.0
    %1681 = vmatpush1.msra.mxu0 0.0
    %1682 = vmatprep.subr.mxu0 0.0
    %1683 = vmatpush1.msra.mxu0 0.0
    %1684 = vmatprep.subr.mxu0 0.0
    %1685 = vmatpush1.msra.mxu0 0.0
    %1686 = vmatprep.subr.mxu0 0.0
    %1687 = vmatpush1.msra.mxu0 0.0
    %1688 = vmatprep.subr.mxu0 0.0
    %1689 = vmatpush1.msra.mxu0 0.0
    %1690 = vmatprep.subr.mxu0 0.0
    %1691 = vmatpush1.msra.mxu0 0.0
    %1692 = vmatprep.subr.mxu0 0.0
    %1693 = vmatpush1.msra.mxu0 0.0
    %1694 = vmatprep.subr.mxu0 0.0
    %1695 = vmatpush1.msra.mxu0 0.0
    %1696 = vmatprep.subr.mxu0 0.0
    %1697 = vmatpush1.msra.mxu0 0.0
    %1698 = vmatprep.subr.mxu0 0.0
    %1699 = vmatpush1.msra.mxu0 0.0
    %1700 = vmatprep.subr.mxu0 0.0
    %1701 = vmatpush1.msra.mxu0 0.0
    %1702 = vmatprep.subr.mxu0 0.0
    %1703 = vmatpush1.msra.mxu0 0.0
    %1704 = vmatprep.subr.mxu0 0.0
    %1705 = vmatpush1.msra.mxu0 0.0
    %1706 = vmatprep.subr.mxu0 0.0
    %1707 = vmatpush1.msra.mxu0 0.0
    %1708 = vmatprep.mubr.f32.mxu0 0.0
    %1709 = vmatmul.mubr.f32.gmra.mrb[0].mxu0 %v1562
    %v1710 = vpop.f32.mrb[0].mxu0
    %v1711 = vadd.f32 %v1547, %v1710
    %v1712 = vpop.f32.mrb[0].mxu0
    %v1713 = vadd.f32 %v1551, %v1712
    %1714 = vdwg.mxu0
    %vm1715 = vcmp.ge.f32.partialorder %v1640, 0.0
    %vm1716 = vcmp.ge.f32.partialorder %v1642, 0.0
    %vm1717 = vcmp.ge.f32.partialorder %v1711, 0.0
    %vm1718 = vcmp.ge.f32.partialorder %v1713, 0.0
    %v1719 = vmul.f32 %v1640, 0.01
    %v1720 = vmul.f32 %v1642, 0.01
    %v1721 = vmul.f32 %v1711, 0.01
    %v1722 = vmul.f32 %v1713, 0.01
    %v1723 = vsel %vm1715, %v1640, %v1719
    %v1724 = vsel %vm1716, %v1642, %v1720
    %v1725 = vsel %vm1717, %v1711, %v1721
    %v1726 = vsel %vm1718, %v1713, %v1722
    %v1727 = vpack.c.bf16 %v1723, %v1723
    %v1728 = vpack.c.bf16 %v1724, %v1724
    %v1729 = vpack.c.bf16 %v1725, %v1725
    %v1730 = vpack.c.bf16 %v1726, %v1726
    %v1731 = vld [vmem:[%s5] sm:$0xff]
    %v1732 = vld [vmem:[%s5 + $0x8] sm:$0xff]
    %v1733 = vld [vmem:[%s5 + $0x10] sm:$0xff]
    %v1734 = vld [vmem:[%s5 + $0x18] sm:$0xff]
    %v1735 = vld [vmem:[%s5 + $0x20] sm:$0xff]
    %v1736 = vld [vmem:[%s5 + $0x28] sm:$0xff]
    %v1737 = vld [vmem:[%s5 + $0x30] sm:$0xff]
    %v1738 = vld [vmem:[%s5 + $0x38] sm:$0xff]
    %v1739 = vld [vmem:[%s5 + $0x40] sm:$0xff]
    %v1740 = vld [vmem:[%s5 + $0x48] sm:$0xff]
    %v1741 = vld [vmem:[%s5 + $0x50] sm:$0xff]
    %v1742 = vld [vmem:[%s5 + $0x58] sm:$0xff]
    %v1743 = vld [vmem:[%s5 + $0x60] sm:$0xff]
    %v1744 = vld [vmem:[%s5 + $0x68] sm:$0xff]
    %v1745 = vld [vmem:[%s5 + $0x70] sm:$0xff]
    %v1746 = vld [vmem:[%s5 + $0x78] sm:$0xff]
    %v1747 = vld [vmem:[%s5 + $0x80] sm:$0xff]
    %v1748 = vld [vmem:[%s5 + $0x88] sm:$0xff]
    %v1749 = vld [vmem:[%s5 + $0x90] sm:$0xff]
    %v1750 = vld [vmem:[%s5 + $0x98] sm:$0xff]
    %v1751 = vld [vmem:[%s5 + $0xa0] sm:$0xff]
    %v1752 = vld [vmem:[%s5 + $0xa8] sm:$0xff]
    %v1753 = vld [vmem:[%s5 + $0xb0] sm:$0xff]
    %v1754 = vld [vmem:[%s5 + $0xb8] sm:$0xff]
    %v1755 = vld [vmem:[%s5 + $0xc0] sm:$0xff]
    %v1756 = vld [vmem:[%s5 + $0xc8] sm:$0xff]
    %v1757 = vld [vmem:[%s5 + $0xd0] sm:$0xff]
    %v1758 = vld [vmem:[%s5 + $0xd8] sm:$0xff]
    %v1759 = vld [vmem:[%s5 + $0xe0] sm:$0xff]
    %v1760 = vld [vmem:[%s5 + $0xe8] sm:$0xff]
    %v1761 = vld [vmem:[%s5 + $0xf0] sm:$0xff]
    %v1762 = vld [vmem:[%s5 + $0xf8] sm:$0xff]
    %v1763 = vld [vmem:[%s5 + $0x100] sm:$0xff]
    %v1764 = vld [vmem:[%s5 + $0x108] sm:$0xff]
    %v1765 = vld [vmem:[%s5 + $0x110] sm:$0xff]
    %v1766 = vld [vmem:[%s5 + $0x118] sm:$0xff]
    %v1767 = vld [vmem:[%s5 + $0x120] sm:$0xff]
    %v1768 = vld [vmem:[%s5 + $0x128] sm:$0xff]
    %v1769 = vld [vmem:[%s5 + $0x130] sm:$0xff]
    %v1770 = vld [vmem:[%s5 + $0x138] sm:$0xff]
    %v1771 = vld [vmem:[%s5 + $0x140] sm:$0xff]
    %v1772 = vld [vmem:[%s5 + $0x148] sm:$0xff]
    %v1773 = vld [vmem:[%s5 + $0x150] sm:$0xff]
    %v1774 = vld [vmem:[%s5 + $0x158] sm:$0xff]
    %v1775 = vld [vmem:[%s5 + $0x160] sm:$0xff]
    %v1776 = vld [vmem:[%s5 + $0x168] sm:$0xff]
    %v1777 = vld [vmem:[%s5 + $0x170] sm:$0xff]
    %v1778 = vld [vmem:[%s5 + $0x178] sm:$0xff]
    %v1779 = vld [vmem:[%s5 + $0x180] sm:$0xff]
    %v1780 = vld [vmem:[%s5 + $0x188] sm:$0xff]
    %v1781 = vld [vmem:[%s5 + $0x190] sm:$0xff]
    %v1782 = vld [vmem:[%s5 + $0x198] sm:$0xff]
    %v1783 = vld [vmem:[%s5 + $0x1a0] sm:$0xff]
    %v1784 = vld [vmem:[%s5 + $0x1a8] sm:$0xff]
    %v1785 = vld [vmem:[%s5 + $0x1b0] sm:$0xff]
    %v1786 = vld [vmem:[%s5 + $0x1b8] sm:$0xff]
    %v1787 = vld [vmem:[%s5 + $0x1c0] sm:$0xff]
    %v1788 = vld [vmem:[%s5 + $0x1c8] sm:$0xff]
    %v1789 = vld [vmem:[%s5 + $0x1d0] sm:$0xff]
    %v1790 = vld [vmem:[%s5 + $0x1d8] sm:$0xff]
    %v1791 = vld [vmem:[%s5 + $0x1e0] sm:$0xff]
    %v1792 = vld [vmem:[%s5 + $0x1e8] sm:$0xff]
    %v1793 = vld [vmem:[%s5 + $0x1f0] sm:$0xff]
    %v1794 = vld [vmem:[%s5 + $0x1f8] sm:$0xff]
    %v1795 = vld [vmem:[%s5 + $0x200] sm:$0xff]
    %v1796 = vld [vmem:[%s5 + $0x208] sm:$0xff]
    %v1797 = vld [vmem:[%s5 + $0x210] sm:$0xff]
    %v1798 = vld [vmem:[%s5 + $0x218] sm:$0xff]
    %v1799 = vld [vmem:[%s5 + $0x220] sm:$0xff]
    %v1800 = vld [vmem:[%s5 + $0x228] sm:$0xff]
    %v1801 = vld [vmem:[%s5 + $0x230] sm:$0xff]
    %v1802 = vld [vmem:[%s5 + $0x238] sm:$0xff]
    %v1803 = vld [vmem:[%s5 + $0x240] sm:$0xff]
    %v1804 = vld [vmem:[%s5 + $0x248] sm:$0xff]
    %v1805 = vld [vmem:[%s5 + $0x250] sm:$0xff]
    %v1806 = vld [vmem:[%s5 + $0x258] sm:$0xff]
    %v1807 = vld [vmem:[%s5 + $0x260] sm:$0xff]
    %v1808 = vld [vmem:[%s5 + $0x268] sm:$0xff]
    %v1809 = vld [vmem:[%s5 + $0x270] sm:$0xff]
    %v1810 = vld [vmem:[%s5 + $0x278] sm:$0xff]
    %v1811 = vld [vmem:[%s5 + $0x280] sm:$0xff]
    %v1812 = vld [vmem:[%s5 + $0x288] sm:$0xff]
    %v1813 = vld [vmem:[%s5 + $0x290] sm:$0xff]
    %v1814 = vld [vmem:[%s5 + $0x298] sm:$0xff]
    %v1815 = vld [vmem:[%s5 + $0x2a0] sm:$0xff]
    %v1816 = vld [vmem:[%s5 + $0x2a8] sm:$0xff]
    %v1817 = vld [vmem:[%s5 + $0x2b0] sm:$0xff]
    %v1818 = vld [vmem:[%s5 + $0x2b8] sm:$0xff]
    %v1819 = vld [vmem:[%s5 + $0x2c0] sm:$0xff]
    %v1820 = vld [vmem:[%s5 + $0x2c8] sm:$0xff]
    %v1821 = vld [vmem:[%s5 + $0x2d0] sm:$0xff]
    %v1822 = vld [vmem:[%s5 + $0x2d8] sm:$0xff]
    %v1823 = vld [vmem:[%s5 + $0x2e0] sm:$0xff]
    %v1824 = vld [vmem:[%s5 + $0x2e8] sm:$0xff]
    %v1825 = vld [vmem:[%s5 + $0x2f0] sm:$0xff]
    %v1826 = vld [vmem:[%s5 + $0x2f8] sm:$0xff]
    %v1827 = vld [vmem:[%s5 + $0x300] sm:$0xff]
    %v1828 = vld [vmem:[%s5 + $0x308] sm:$0xff]
    %v1829 = vld [vmem:[%s5 + $0x310] sm:$0xff]
    %v1830 = vld [vmem:[%s5 + $0x318] sm:$0xff]
    %v1831 = vld [vmem:[%s5 + $0x320] sm:$0xff]
    %v1832 = vld [vmem:[%s5 + $0x328] sm:$0xff]
    %v1833 = vld [vmem:[%s5 + $0x330] sm:$0xff]
    %v1834 = vld [vmem:[%s5 + $0x338] sm:$0xff]
    %v1835 = vld [vmem:[%s5 + $0x340] sm:$0xff]
    %v1836 = vld [vmem:[%s5 + $0x348] sm:$0xff]
    %v1837 = vld [vmem:[%s5 + $0x350] sm:$0xff]
    %v1838 = vld [vmem:[%s5 + $0x358] sm:$0xff]
    %v1839 = vld [vmem:[%s5 + $0x360] sm:$0xff]
    %v1840 = vld [vmem:[%s5 + $0x368] sm:$0xff]
    %v1841 = vld [vmem:[%s5 + $0x370] sm:$0xff]
    %v1842 = vld [vmem:[%s5 + $0x378] sm:$0xff]
    %v1843 = vld [vmem:[%s5 + $0x380] sm:$0xff]
    %v1844 = vld [vmem:[%s5 + $0x388] sm:$0xff]
    %v1845 = vld [vmem:[%s5 + $0x390] sm:$0xff]
    %v1846 = vld [vmem:[%s5 + $0x398] sm:$0xff]
    %v1847 = vld [vmem:[%s5 + $0x3a0] sm:$0xff]
    %v1848 = vld [vmem:[%s5 + $0x3a8] sm:$0xff]
    %v1849 = vld [vmem:[%s5 + $0x3b0] sm:$0xff]
    %v1850 = vld [vmem:[%s5 + $0x3b8] sm:$0xff]
    %v1851 = vld [vmem:[%s5 + $0x3c0] sm:$0xff]
    %v1852 = vld [vmem:[%s5 + $0x3c8] sm:$0xff]
    %v1853 = vld [vmem:[%s5 + $0x3d0] sm:$0xff]
    %v1854 = vld [vmem:[%s5 + $0x3d8] sm:$0xff]
    %v1855 = vld [vmem:[%s5 + $0x3e0] sm:$0xff]
    %v1856 = vld [vmem:[%s5 + $0x3e8] sm:$0xff]
    %v1857 = vld [vmem:[%s5 + $0x3f0] sm:$0xff]
    %v1858 = vld [vmem:[%s5 + $0x3f8] sm:$0xff]
    %v1860 = vlaneseq
    %v1861 = vshrl.u32 %v1860, 7
    %v1862 = vsub.s32 0, %v1861
    %v1863 = vrot.slane %v45, %v1862
    %v1864 = vlaneseq
    %v1865 = vshrl.u32 %v1864, 7
    %v1866 = vsub.s32 1, %v1865
    %v1867 = vrot.slane %v45, %v1866
    %v1868 = vlaneseq
    %v1869 = vshrl.u32 %v1868, 7
    %v1870 = vsub.s32 2, %v1869
    %v1871 = vrot.slane %v45, %v1870
    %v1872 = vlaneseq
    %v1873 = vshrl.u32 %v1872, 7
    %v1874 = vsub.s32 3, %v1873
    %v1875 = vrot.slane %v45, %v1874
    %v2008 = vunpack.c.l.b16 %v1731
    %v2009 = vunpack.c.h.b16 %v1731
    %v2010 = vunpack.c.l.b16 %v1732
    %v2011 = vunpack.c.h.b16 %v1732
    %v2012 = vunpack.c.l.b16 %v1733
    %v2013 = vunpack.c.h.b16 %v1733
    %v2014 = vunpack.c.l.b16 %v1734
    %v2015 = vunpack.c.h.b16 %v1734
    %v2016 = vunpack.c.l.b16 %v1735
    %v2017 = vunpack.c.h.b16 %v1735
    %v2018 = vunpack.c.l.b16 %v1736
    %v2019 = vunpack.c.h.b16 %v1736
    %v2020 = vunpack.c.l.b16 %v1737
    %v2021 = vunpack.c.h.b16 %v1737
    %v2022 = vunpack.c.l.b16 %v1738
    %v2023 = vunpack.c.h.b16 %v1738
    %v2024 = vunpack.c.l.b16 %v1739
    %v2025 = vunpack.c.h.b16 %v1739
    %v2026 = vunpack.c.l.b16 %v1740
    %v2027 = vunpack.c.h.b16 %v1740
    %v2028 = vunpack.c.l.b16 %v1741
    %v2029 = vunpack.c.h.b16 %v1741
    %v2030 = vunpack.c.l.b16 %v1742
    %v2031 = vunpack.c.h.b16 %v1742
    %v2032 = vunpack.c.l.b16 %v1743
    %v2033 = vunpack.c.h.b16 %v1743
    %v2034 = vunpack.c.l.b16 %v1744
    %v2035 = vunpack.c.h.b16 %v1744
    %v2036 = vunpack.c.l.b16 %v1745
    %v2037 = vunpack.c.h.b16 %v1745
    %v2038 = vunpack.c.l.b16 %v1746
    %v2039 = vunpack.c.h.b16 %v1746
    %v2040 = vunpack.c.l.b16 %v1747
    %v2041 = vunpack.c.h.b16 %v1747
    %v2042 = vunpack.c.l.b16 %v1748
    %v2043 = vunpack.c.h.b16 %v1748
    %v2044 = vunpack.c.l.b16 %v1749
    %v2045 = vunpack.c.h.b16 %v1749
    %v2046 = vunpack.c.l.b16 %v1750
    %v2047 = vunpack.c.h.b16 %v1750
    %v2048 = vunpack.c.l.b16 %v1751
    %v2049 = vunpack.c.h.b16 %v1751
    %v2050 = vunpack.c.l.b16 %v1752
    %v2051 = vunpack.c.h.b16 %v1752
    %v2052 = vunpack.c.l.b16 %v1753
    %v2053 = vunpack.c.h.b16 %v1753
    %v2054 = vunpack.c.l.b16 %v1754
    %v2055 = vunpack.c.h.b16 %v1754
    %v2056 = vunpack.c.l.b16 %v1755
    %v2057 = vunpack.c.h.b16 %v1755
    %v2058 = vunpack.c.l.b16 %v1756
    %v2059 = vunpack.c.h.b16 %v1756
    %v2060 = vunpack.c.l.b16 %v1757
    %v2061 = vunpack.c.h.b16 %v1757
    %v2062 = vunpack.c.l.b16 %v1758
    %v2063 = vunpack.c.h.b16 %v1758
    %v2064 = vunpack.c.l.b16 %v1759
    %v2065 = vunpack.c.h.b16 %v1759
    %v2066 = vunpack.c.l.b16 %v1760
    %v2067 = vunpack.c.h.b16 %v1760
    %v2068 = vunpack.c.l.b16 %v1761
    %v2069 = vunpack.c.h.b16 %v1761
    %v2070 = vunpack.c.l.b16 %v1762
    %v2071 = vunpack.c.h.b16 %v1762
    %v2072 = vunpack.c.l.b16 %v1763
    %v2073 = vunpack.c.h.b16 %v1763
    %v2074 = vunpack.c.l.b16 %v1764
    %v2075 = vunpack.c.h.b16 %v1764
    %v2076 = vunpack.c.l.b16 %v1765
    %v2077 = vunpack.c.h.b16 %v1765
    %v2078 = vunpack.c.l.b16 %v1766
    %v2079 = vunpack.c.h.b16 %v1766
    %v2080 = vunpack.c.l.b16 %v1767
    %v2081 = vunpack.c.h.b16 %v1767
    %v2082 = vunpack.c.l.b16 %v1768
    %v2083 = vunpack.c.h.b16 %v1768
    %v2084 = vunpack.c.l.b16 %v1769
    %v2085 = vunpack.c.h.b16 %v1769
    %v2086 = vunpack.c.l.b16 %v1770
    %v2087 = vunpack.c.h.b16 %v1770
    %v2088 = vunpack.c.l.b16 %v1771
    %v2089 = vunpack.c.h.b16 %v1771
    %v2090 = vunpack.c.l.b16 %v1772
    %v2091 = vunpack.c.h.b16 %v1772
    %v2092 = vunpack.c.l.b16 %v1773
    %v2093 = vunpack.c.h.b16 %v1773
    %v2094 = vunpack.c.l.b16 %v1774
    %v2095 = vunpack.c.h.b16 %v1774
    %v2096 = vunpack.c.l.b16 %v1775
    %v2097 = vunpack.c.h.b16 %v1775
    %v2098 = vunpack.c.l.b16 %v1776
    %v2099 = vunpack.c.h.b16 %v1776
    %v2100 = vunpack.c.l.b16 %v1777
    %v2101 = vunpack.c.h.b16 %v1777
    %v2102 = vunpack.c.l.b16 %v1778
    %v2103 = vunpack.c.h.b16 %v1778
    %v2104 = vunpack.c.l.b16 %v1779
    %v2105 = vunpack.c.h.b16 %v1779
    %v2106 = vunpack.c.l.b16 %v1780
    %v2107 = vunpack.c.h.b16 %v1780
    %v2108 = vunpack.c.l.b16 %v1781
    %v2109 = vunpack.c.h.b16 %v1781
    %v2110 = vunpack.c.l.b16 %v1782
    %v2111 = vunpack.c.h.b16 %v1782
    %v2112 = vunpack.c.l.b16 %v1783
    %v2113 = vunpack.c.h.b16 %v1783
    %v2114 = vunpack.c.l.b16 %v1784
    %v2115 = vunpack.c.h.b16 %v1784
    %v2116 = vunpack.c.l.b16 %v1785
    %v2117 = vunpack.c.h.b16 %v1785
    %v2118 = vunpack.c.l.b16 %v1786
    %v2119 = vunpack.c.h.b16 %v1786
    %v2120 = vunpack.c.l.b16 %v1787
    %v2121 = vunpack.c.h.b16 %v1787
    %v2122 = vunpack.c.l.b16 %v1788
    %v2123 = vunpack.c.h.b16 %v1788
    %v2124 = vunpack.c.l.b16 %v1789
    %v2125 = vunpack.c.h.b16 %v1789
    %v2126 = vunpack.c.l.b16 %v1790
    %v2127 = vunpack.c.h.b16 %v1790
    %v2128 = vunpack.c.l.b16 %v1791
    %v2129 = vunpack.c.h.b16 %v1791
    %v2130 = vunpack.c.l.b16 %v1792
    %v2131 = vunpack.c.h.b16 %v1792
    %v2132 = vunpack.c.l.b16 %v1793
    %v2133 = vunpack.c.h.b16 %v1793
    %v2134 = vunpack.c.l.b16 %v1794
    %v2135 = vunpack.c.h.b16 %v1794
    %v2136 = vunpack.c.l.b16 %v1795
    %v2137 = vunpack.c.h.b16 %v1795
    %v2138 = vunpack.c.l.b16 %v1796
    %v2139 = vunpack.c.h.b16 %v1796
    %v2140 = vunpack.c.l.b16 %v1797
    %v2141 = vunpack.c.h.b16 %v1797
    %v2142 = vunpack.c.l.b16 %v1798
    %v2143 = vunpack.c.h.b16 %v1798
    %v2144 = vunpack.c.l.b16 %v1799
    %v2145 = vunpack.c.h.b16 %v1799
    %v2146 = vunpack.c.l.b16 %v1800
    %v2147 = vunpack.c.h.b16 %v1800
    %v2148 = vunpack.c.l.b16 %v1801
    %v2149 = vunpack.c.h.b16 %v1801
    %v2150 = vunpack.c.l.b16 %v1802
    %v2151 = vunpack.c.h.b16 %v1802
    %v2152 = vunpack.c.l.b16 %v1803
    %v2153 = vunpack.c.h.b16 %v1803
    %v2154 = vunpack.c.l.b16 %v1804
    %v2155 = vunpack.c.h.b16 %v1804
    %v2156 = vunpack.c.l.b16 %v1805
    %v2157 = vunpack.c.h.b16 %v1805
    %v2158 = vunpack.c.l.b16 %v1806
    %v2159 = vunpack.c.h.b16 %v1806
    %v2160 = vunpack.c.l.b16 %v1807
    %v2161 = vunpack.c.h.b16 %v1807
    %v2162 = vunpack.c.l.b16 %v1808
    %v2163 = vunpack.c.h.b16 %v1808
    %v2164 = vunpack.c.l.b16 %v1809
    %v2165 = vunpack.c.h.b16 %v1809
    %v2166 = vunpack.c.l.b16 %v1810
    %v2167 = vunpack.c.h.b16 %v1810
    %v2168 = vunpack.c.l.b16 %v1811
    %v2169 = vunpack.c.h.b16 %v1811
    %v2170 = vunpack.c.l.b16 %v1812
    %v2171 = vunpack.c.h.b16 %v1812
    %v2172 = vunpack.c.l.b16 %v1813
    %v2173 = vunpack.c.h.b16 %v1813
    %v2174 = vunpack.c.l.b16 %v1814
    %v2175 = vunpack.c.h.b16 %v1814
    %v2176 = vunpack.c.l.b16 %v1815
    %v2177 = vunpack.c.h.b16 %v1815
    %v2178 = vunpack.c.l.b16 %v1816
    %v2179 = vunpack.c.h.b16 %v1816
    %v2180 = vunpack.c.l.b16 %v1817
    %v2181 = vunpack.c.h.b16 %v1817
    %v2182 = vunpack.c.l.b16 %v1818
    %v2183 = vunpack.c.h.b16 %v1818
    %v2184 = vunpack.c.l.b16 %v1819
    %v2185 = vunpack.c.h.b16 %v1819
    %v2186 = vunpack.c.l.b16 %v1820
    %v2187 = vunpack.c.h.b16 %v1820
    %v2188 = vunpack.c.l.b16 %v1821
    %v2189 = vunpack.c.h.b16 %v1821
    %v2190 = vunpack.c.l.b16 %v1822
    %v2191 = vunpack.c.h.b16 %v1822
    %v2192 = vunpack.c.l.b16 %v1823
    %v2193 = vunpack.c.h.b16 %v1823
    %v2194 = vunpack.c.l.b16 %v1824
    %v2195 = vunpack.c.h.b16 %v1824
    %v2196 = vunpack.c.l.b16 %v1825
    %v2197 = vunpack.c.h.b16 %v1825
    %v2198 = vunpack.c.l.b16 %v1826
    %v2199 = vunpack.c.h.b16 %v1826
    %v2200 = vunpack.c.l.b16 %v1827
    %v2201 = vunpack.c.h.b16 %v1827
    %v2202 = vunpack.c.l.b16 %v1828
    %v2203 = vunpack.c.h.b16 %v1828
    %v2204 = vunpack.c.l.b16 %v1829
    %v2205 = vunpack.c.h.b16 %v1829
    %v2206 = vunpack.c.l.b16 %v1830
    %v2207 = vunpack.c.h.b16 %v1830
    %v2208 = vunpack.c.l.b16 %v1831
    %v2209 = vunpack.c.h.b16 %v1831
    %v2210 = vunpack.c.l.b16 %v1832
    %v2211 = vunpack.c.h.b16 %v1832
    %v2212 = vunpack.c.l.b16 %v1833
    %v2213 = vunpack.c.h.b16 %v1833
    %v2214 = vunpack.c.l.b16 %v1834
    %v2215 = vunpack.c.h.b16 %v1834
    %v2216 = vunpack.c.l.b16 %v1835
    %v2217 = vunpack.c.h.b16 %v1835
    %v2218 = vunpack.c.l.b16 %v1836
    %v2219 = vunpack.c.h.b16 %v1836
    %v2220 = vunpack.c.l.b16 %v1837
    %v2221 = vunpack.c.h.b16 %v1837
    %v2222 = vunpack.c.l.b16 %v1838
    %v2223 = vunpack.c.h.b16 %v1838
    %v2224 = vunpack.c.l.b16 %v1839
    %v2225 = vunpack.c.h.b16 %v1839
    %v2226 = vunpack.c.l.b16 %v1840
    %v2227 = vunpack.c.h.b16 %v1840
    %v2228 = vunpack.c.l.b16 %v1841
    %v2229 = vunpack.c.h.b16 %v1841
    %v2230 = vunpack.c.l.b16 %v1842
    %v2231 = vunpack.c.h.b16 %v1842
    %v2232 = vunpack.c.l.b16 %v1843
    %v2233 = vunpack.c.h.b16 %v1843
    %v2234 = vunpack.c.l.b16 %v1844
    %v2235 = vunpack.c.h.b16 %v1844
    %v2236 = vunpack.c.l.b16 %v1845
    %v2237 = vunpack.c.h.b16 %v1845
    %v2238 = vunpack.c.l.b16 %v1846
    %v2239 = vunpack.c.h.b16 %v1846
    %v2240 = vunpack.c.l.b16 %v1847
    %v2241 = vunpack.c.h.b16 %v1847
    %v2242 = vunpack.c.l.b16 %v1848
    %v2243 = vunpack.c.h.b16 %v1848
    %v2244 = vunpack.c.l.b16 %v1849
    %v2245 = vunpack.c.h.b16 %v1849
    %v2246 = vunpack.c.l.b16 %v1850
    %v2247 = vunpack.c.h.b16 %v1850
    %v2248 = vunpack.c.l.b16 %v1851
    %v2249 = vunpack.c.h.b16 %v1851
    %v2250 = vunpack.c.l.b16 %v1852
    %v2251 = vunpack.c.h.b16 %v1852
    %v2252 = vunpack.c.l.b16 %v1853
    %v2253 = vunpack.c.h.b16 %v1853
    %v2254 = vunpack.c.l.b16 %v1854
    %v2255 = vunpack.c.h.b16 %v1854
    %v2256 = vunpack.c.l.b16 %v1855
    %v2257 = vunpack.c.h.b16 %v1855
    %v2258 = vunpack.c.l.b16 %v1856
    %v2259 = vunpack.c.h.b16 %v1856
    %v2260 = vunpack.c.l.b16 %v1857
    %v2261 = vunpack.c.h.b16 %v1857
    %v2262 = vunpack.c.l.b16 %v1858
    %v2263 = vunpack.c.h.b16 %v1858
    %v2264 = vpack.c.b16 %v2012, %v2008
    %v2265 = vpack.c.b16 %v2013, %v2009
    %v2266 = vpack.c.b16 %v2014, %v2010
    %v2267 = vpack.c.b16 %v2015, %v2011
    %v2268 = vpack.c.b16 %v2020, %v2016
    %v2269 = vpack.c.b16 %v2021, %v2017
    %v2270 = vpack.c.b16 %v2022, %v2018
    %v2271 = vpack.c.b16 %v2023, %v2019
    %v2272 = vpack.c.b16 %v2028, %v2024
    %v2273 = vpack.c.b16 %v2029, %v2025
    %v2274 = vpack.c.b16 %v2030, %v2026
    %v2275 = vpack.c.b16 %v2031, %v2027
    %v2276 = vpack.c.b16 %v2036, %v2032
    %v2277 = vpack.c.b16 %v2037, %v2033
    %v2278 = vpack.c.b16 %v2038, %v2034
    %v2279 = vpack.c.b16 %v2039, %v2035
    %v2280 = vpack.c.b16 %v2044, %v2040
    %v2281 = vpack.c.b16 %v2045, %v2041
    %v2282 = vpack.c.b16 %v2046, %v2042
    %v2283 = vpack.c.b16 %v2047, %v2043
    %v2284 = vpack.c.b16 %v2052, %v2048
    %v2285 = vpack.c.b16 %v2053, %v2049
    %v2286 = vpack.c.b16 %v2054, %v2050
    %v2287 = vpack.c.b16 %v2055, %v2051
    %v2288 = vpack.c.b16 %v2060, %v2056
    %v2289 = vpack.c.b16 %v2061, %v2057
    %v2290 = vpack.c.b16 %v2062, %v2058
    %v2291 = vpack.c.b16 %v2063, %v2059
    %v2292 = vpack.c.b16 %v2068, %v2064
    %v2293 = vpack.c.b16 %v2069, %v2065
    %v2294 = vpack.c.b16 %v2070, %v2066
    %v2295 = vpack.c.b16 %v2071, %v2067
    %v2296 = vpack.c.b16 %v2076, %v2072
    %v2297 = vpack.c.b16 %v2077, %v2073
    %v2298 = vpack.c.b16 %v2078, %v2074
    %v2299 = vpack.c.b16 %v2079, %v2075
    %v2300 = vpack.c.b16 %v2084, %v2080
    %v2301 = vpack.c.b16 %v2085, %v2081
    %v2302 = vpack.c.b16 %v2086, %v2082
    %v2303 = vpack.c.b16 %v2087, %v2083
    %v2304 = vpack.c.b16 %v2092, %v2088
    %v2305 = vpack.c.b16 %v2093, %v2089
    %v2306 = vpack.c.b16 %v2094, %v2090
    %v2307 = vpack.c.b16 %v2095, %v2091
    %v2308 = vpack.c.b16 %v2100, %v2096
    %v2309 = vpack.c.b16 %v2101, %v2097
    %v2310 = vpack.c.b16 %v2102, %v2098
    %v2311 = vpack.c.b16 %v2103, %v2099
    %v2312 = vpack.c.b16 %v2108, %v2104
    %v2313 = vpack.c.b16 %v2109, %v2105
    %v2314 = vpack.c.b16 %v2110, %v2106
    %v2315 = vpack.c.b16 %v2111, %v2107
    %v2316 = vpack.c.b16 %v2116, %v2112
    %v2317 = vpack.c.b16 %v2117, %v2113
    %v2318 = vpack.c.b16 %v2118, %v2114
    %v2319 = vpack.c.b16 %v2119, %v2115
    %v2320 = vpack.c.b16 %v2124, %v2120
    %v2321 = vpack.c.b16 %v2125, %v2121
    %v2322 = vpack.c.b16 %v2126, %v2122
    %v2323 = vpack.c.b16 %v2127, %v2123
    %v2324 = vpack.c.b16 %v2132, %v2128
    %v2325 = vpack.c.b16 %v2133, %v2129
    %v2326 = vpack.c.b16 %v2134, %v2130
    %v2327 = vpack.c.b16 %v2135, %v2131
    %v2328 = vpack.c.b16 %v2140, %v2136
    %v2329 = vpack.c.b16 %v2141, %v2137
    %v2330 = vpack.c.b16 %v2142, %v2138
    %v2331 = vpack.c.b16 %v2143, %v2139
    %v2332 = vpack.c.b16 %v2148, %v2144
    %v2333 = vpack.c.b16 %v2149, %v2145
    %v2334 = vpack.c.b16 %v2150, %v2146
    %v2335 = vpack.c.b16 %v2151, %v2147
    %v2336 = vpack.c.b16 %v2156, %v2152
    %v2337 = vpack.c.b16 %v2157, %v2153
    %v2338 = vpack.c.b16 %v2158, %v2154
    %v2339 = vpack.c.b16 %v2159, %v2155
    %v2340 = vpack.c.b16 %v2164, %v2160
    %v2341 = vpack.c.b16 %v2165, %v2161
    %v2342 = vpack.c.b16 %v2166, %v2162
    %v2343 = vpack.c.b16 %v2167, %v2163
    %v2344 = vpack.c.b16 %v2172, %v2168
    %v2345 = vpack.c.b16 %v2173, %v2169
    %v2346 = vpack.c.b16 %v2174, %v2170
    %v2347 = vpack.c.b16 %v2175, %v2171
    %v2348 = vpack.c.b16 %v2180, %v2176
    %v2349 = vpack.c.b16 %v2181, %v2177
    %v2350 = vpack.c.b16 %v2182, %v2178
    %v2351 = vpack.c.b16 %v2183, %v2179
    %v2352 = vpack.c.b16 %v2188, %v2184
    %v2353 = vpack.c.b16 %v2189, %v2185
    %v2354 = vpack.c.b16 %v2190, %v2186
    %v2355 = vpack.c.b16 %v2191, %v2187
    %v2356 = vpack.c.b16 %v2196, %v2192
    %v2357 = vpack.c.b16 %v2197, %v2193
    %v2358 = vpack.c.b16 %v2198, %v2194
    %v2359 = vpack.c.b16 %v2199, %v2195
    %v2360 = vpack.c.b16 %v2204, %v2200
    %v2361 = vpack.c.b16 %v2205, %v2201
    %v2362 = vpack.c.b16 %v2206, %v2202
    %v2363 = vpack.c.b16 %v2207, %v2203
    %v2364 = vpack.c.b16 %v2212, %v2208
    %v2365 = vpack.c.b16 %v2213, %v2209
    %v2366 = vpack.c.b16 %v2214, %v2210
    %v2367 = vpack.c.b16 %v2215, %v2211
    %v2368 = vpack.c.b16 %v2220, %v2216
    %v2369 = vpack.c.b16 %v2221, %v2217
    %v2370 = vpack.c.b16 %v2222, %v2218
    %v2371 = vpack.c.b16 %v2223, %v2219
    %v2372 = vpack.c.b16 %v2228, %v2224
    %v2373 = vpack.c.b16 %v2229, %v2225
    %v2374 = vpack.c.b16 %v2230, %v2226
    %v2375 = vpack.c.b16 %v2231, %v2227
    %v2376 = vpack.c.b16 %v2236, %v2232
    %v2377 = vpack.c.b16 %v2237, %v2233
    %v2378 = vpack.c.b16 %v2238, %v2234
    %v2379 = vpack.c.b16 %v2239, %v2235
    %v2380 = vpack.c.b16 %v2244, %v2240
    %v2381 = vpack.c.b16 %v2245, %v2241
    %v2382 = vpack.c.b16 %v2246, %v2242
    %v2383 = vpack.c.b16 %v2247, %v2243
    %v2384 = vpack.c.b16 %v2252, %v2248
    %v2385 = vpack.c.b16 %v2253, %v2249
    %v2386 = vpack.c.b16 %v2254, %v2250
    %v2387 = vpack.c.b16 %v2255, %v2251
    %v2388 = vpack.c.b16 %v2260, %v2256
    %v2389 = vpack.c.b16 %v2261, %v2257
    %v2390 = vpack.c.b16 %v2262, %v2258
    %v2391 = vpack.c.b16 %v2263, %v2259
    %2520 = vmatprep.subr.bf16.mxu0 %v2265
    %2521 = vmatpush1.bf16.msra.mxu0 %v2264
    %2522 = vmatprep.subr.bf16.mxu0 %v2269
    %2523 = vmatpush1.bf16.msra.mxu0 %v2268
    %2524 = vmatprep.subr.bf16.mxu0 %v2273
    %2525 = vmatpush1.bf16.msra.mxu0 %v2272
    %2526 = vmatprep.subr.bf16.mxu0 %v2277
    %2527 = vmatpush1.bf16.msra.mxu0 %v2276
    %2528 = vmatprep.subr.bf16.mxu0 %v2281
    %2529 = vmatpush1.bf16.msra.mxu0 %v2280
    %2530 = vmatprep.subr.bf16.mxu0 %v2285
    %2531 = vmatpush1.bf16.msra.mxu0 %v2284
    %2532 = vmatprep.subr.bf16.mxu0 %v2289
    %2533 = vmatpush1.bf16.msra.mxu0 %v2288
    %2534 = vmatprep.subr.bf16.mxu0 %v2293
    %2535 = vmatpush1.bf16.msra.mxu0 %v2292
    %2536 = vmatprep.subr.bf16.mxu0 %v2297
    %2537 = vmatpush1.bf16.msra.mxu0 %v2296
    %2538 = vmatprep.subr.bf16.mxu0 %v2301
    %2539 = vmatpush1.bf16.msra.mxu0 %v2300
    %2540 = vmatprep.subr.bf16.mxu0 %v2305
    %2541 = vmatpush1.bf16.msra.mxu0 %v2304
    %2542 = vmatprep.subr.bf16.mxu0 %v2309
    %2543 = vmatpush1.bf16.msra.mxu0 %v2308
    %2544 = vmatprep.subr.bf16.mxu0 %v2313
    %2545 = vmatpush1.bf16.msra.mxu0 %v2312
    %2546 = vmatprep.subr.bf16.mxu0 %v2317
    %2547 = vmatpush1.bf16.msra.mxu0 %v2316
    %2548 = vmatprep.subr.bf16.mxu0 %v2321
    %2549 = vmatpush1.bf16.msra.mxu0 %v2320
    %2550 = vmatprep.subr.bf16.mxu0 %v2325
    %2551 = vmatpush1.bf16.msra.mxu0 %v2324
    %2552 = vmatprep.mubr.bf16.mxu0 %v1728
    %2553 = vmatmul.mubr.bf16.gmra.mrb[0].mxu0 %v1727
    %v2554 = vpop.f32.mrb[0].mxu0
    %v2555 = vadd.f32 %v1863, %v2554
    %v2556 = vpop.f32.mrb[0].mxu0
    %v2557 = vadd.f32 %v1867, %v2556
    %v2558 = vpop.f32.mrb[0].mxu0
    %v2559 = vpop.f32.mrb[0].mxu0
    %2560 = vdwg.mxu0
    %2561 = vmatprep.subr.bf16.mxu0 %v2329
    %2562 = vmatpush1.bf16.msra.mxu0 %v2328
    %2563 = vmatprep.subr.bf16.mxu0 %v2333
    %2564 = vmatpush1.bf16.msra.mxu0 %v2332
    %2565 = vmatprep.subr.bf16.mxu0 %v2337
    %2566 = vmatpush1.bf16.msra.mxu0 %v2336
    %2567 = vmatprep.subr.bf16.mxu0 %v2341
    %2568 = vmatpush1.bf16.msra.mxu0 %v2340
    %2569 = vmatprep.subr.bf16.mxu0 %v2345
    %2570 = vmatpush1.bf16.msra.mxu0 %v2344
    %2571 = vmatprep.subr.bf16.mxu0 %v2349
    %2572 = vmatpush1.bf16.msra.mxu0 %v2348
    %2573 = vmatprep.subr.bf16.mxu0 %v2353
    %2574 = vmatpush1.bf16.msra.mxu0 %v2352
    %2575 = vmatprep.subr.bf16.mxu0 %v2357
    %2576 = vmatpush1.bf16.msra.mxu0 %v2356
    %2577 = vmatprep.subr.bf16.mxu0 %v2361
    %2578 = vmatpush1.bf16.msra.mxu0 %v2360
    %2579 = vmatprep.subr.bf16.mxu0 %v2365
    %2580 = vmatpush1.bf16.msra.mxu0 %v2364
    %2581 = vmatprep.subr.bf16.mxu0 %v2369
    %2582 = vmatpush1.bf16.msra.mxu0 %v2368
    %2583 = vmatprep.subr.bf16.mxu0 %v2373
    %2584 = vmatpush1.bf16.msra.mxu0 %v2372
    %2585 = vmatprep.subr.bf16.mxu0 %v2377
    %2586 = vmatpush1.bf16.msra.mxu0 %v2376
    %2587 = vmatprep.subr.bf16.mxu0 %v2381
    %2588 = vmatpush1.bf16.msra.mxu0 %v2380
    %2589 = vmatprep.subr.bf16.mxu0 %v2385
    %2590 = vmatpush1.bf16.msra.mxu0 %v2384
    %2591 = vmatprep.subr.bf16.mxu0 %v2389
    %2592 = vmatpush1.bf16.msra.mxu0 %v2388
    %2593 = vmatprep.mubr.bf16.mxu0 %v1730
    %2594 = vmatmul.mubr.bf16.gmra.mrb[0].mxu0 %v1729
    %v2595 = vpop.f32.mrb[0].mxu0
    %v2596 = vadd.f32 %v2555, %v2595
    %v2597 = vpop.f32.mrb[0].mxu0
    %v2598 = vadd.f32 %v2557, %v2597
    %v2599 = vpop.f32.mrb[0].mxu0
    %v2600 = vpop.f32.mrb[0].mxu0
    %2601 = vdwg.mxu0
    %2602 = vmatprep.subr.bf16.mxu0 %v2267
    %2603 = vmatpush1.bf16.msra.mxu0 %v2266
    %2604 = vmatprep.subr.bf16.mxu0 %v2271
    %2605 = vmatpush1.bf16.msra.mxu0 %v2270
    %2606 = vmatprep.subr.bf16.mxu0 %v2275
    %2607 = vmatpush1.bf16.msra.mxu0 %v2274
    %2608 = vmatprep.subr.bf16.mxu0 %v2279
    %2609 = vmatpush1.bf16.msra.mxu0 %v2278
    %2610 = vmatprep.subr.bf16.mxu0 %v2283
    %2611 = vmatpush1.bf16.msra.mxu0 %v2282
    %2612 = vmatprep.subr.bf16.mxu0 %v2287
    %2613 = vmatpush1.bf16.msra.mxu0 %v2286
    %2614 = vmatprep.subr.bf16.mxu0 %v2291
    %2615 = vmatpush1.bf16.msra.mxu0 %v2290
    %2616 = vmatprep.subr.bf16.mxu0 %v2295
    %2617 = vmatpush1.bf16.msra.mxu0 %v2294
    %2618 = vmatprep.subr.bf16.mxu0 %v2299
    %2619 = vmatpush1.bf16.msra.mxu0 %v2298
    %2620 = vmatprep.subr.bf16.mxu0 %v2303
    %2621 = vmatpush1.bf16.msra.mxu0 %v2302
    %2622 = vmatprep.subr.bf16.mxu0 %v2307
    %2623 = vmatpush1.bf16.msra.mxu0 %v2306
    %2624 = vmatprep.subr.bf16.mxu0 %v2311
    %2625 = vmatpush1.bf16.msra.mxu0 %v2310
    %2626 = vmatprep.subr.bf16.mxu0 %v2315
    %2627 = vmatpush1.bf16.msra.mxu0 %v2314
    %2628 = vmatprep.subr.bf16.mxu0 %v2319
    %2629 = vmatpush1.bf16.msra.mxu0 %v2318
    %2630 = vmatprep.subr.bf16.mxu0 %v2323
    %2631 = vmatpush1.bf16.msra.mxu0 %v2322
    %2632 = vmatprep.subr.bf16.mxu0 %v2327
    %2633 = vmatpush1.bf16.msra.mxu0 %v2326
    %2634 = vmatprep.mubr.bf16.mxu0 %v1728
    %2635 = vmatmul.mubr.bf16.gmra.mrb[0].mxu0 %v1727
    %v2636 = vpop.f32.mrb[0].mxu0
    %v2637 = vadd.f32 %v1871, %v2636
    %v2638 = vpop.f32.mrb[0].mxu0
    %v2639 = vadd.f32 %v1875, %v2638
    %v2640 = vpop.f32.mrb[0].mxu0
    %v2641 = vpop.f32.mrb[0].mxu0
    %2642 = vdwg.mxu0
    %2643 = vmatprep.subr.bf16.mxu0 %v2331
    %2644 = vmatpush1.bf16.msra.mxu0 %v2330
    %2645 = vmatprep.subr.bf16.mxu0 %v2335
    %2646 = vmatpush1.bf16.msra.mxu0 %v2334
    %2647 = vmatprep.subr.bf16.mxu0 %v2339
    %2648 = vmatpush1.bf16.msra.mxu0 %v2338
    %2649 = vmatprep.subr.bf16.mxu0 %v2343
    %2650 = vmatpush1.bf16.msra.mxu0 %v2342
    %2651 = vmatprep.subr.bf16.mxu0 %v2347
    %2652 = vmatpush1.bf16.msra.mxu0 %v2346
    %2653 = vmatprep.subr.bf16.mxu0 %v2351
    %2654 = vmatpush1.bf16.msra.mxu0 %v2350
    %2655 = vmatprep.subr.bf16.mxu0 %v2355
    %2656 = vmatpush1.bf16.msra.mxu0 %v2354
    %2657 = vmatprep.subr.bf16.mxu0 %v2359
    %2658 = vmatpush1.bf16.msra.mxu0 %v2358
    %2659 = vmatprep.subr.bf16.mxu0 %v2363
    %2660 = vmatpush1.bf16.msra.mxu0 %v2362
    %2661 = vmatprep.subr.bf16.mxu0 %v2367
    %2662 = vmatpush1.bf16.msra.mxu0 %v2366
    %2663 = vmatprep.subr.bf16.mxu0 %v2371
    %2664 = vmatpush1.bf16.msra.mxu0 %v2370
    %2665 = vmatprep.subr.bf16.mxu0 %v2375
    %2666 = vmatpush1.bf16.msra.mxu0 %v2374
    %2667 = vmatprep.subr.bf16.mxu0 %v2379
    %2668 = vmatpush1.bf16.msra.mxu0 %v2378
    %2669 = vmatprep.subr.bf16.mxu0 %v2383
    %2670 = vmatpush1.bf16.msra.mxu0 %v2382
    %2671 = vmatprep.subr.bf16.mxu0 %v2387
    %2672 = vmatpush1.bf16.msra.mxu0 %v2386
    %2673 = vmatprep.subr.bf16.mxu0 %v2391
    %2674 = vmatpush1.bf16.msra.mxu0 %v2390
    %2675 = vmatprep.mubr.bf16.mxu0 %v1730
    %2676 = vmatmul.mubr.bf16.gmra.mrb[0].mxu0 %v1729
    %v2677 = vpop.f32.mrb[0].mxu0
    %v2678 = vadd.f32 %v2637, %v2677
    %v2679 = vpop.f32.mrb[0].mxu0
    %v2680 = vadd.f32 %v2639, %v2679
    %v2681 = vpop.f32.mrb[0].mxu0
    %v2682 = vpop.f32.mrb[0].mxu0
    %2683 = vdwg.mxu0
    %vm2684 = vcmp.ge.f32.partialorder %v2596, 0.0
    %vm2685 = vcmp.ge.f32.partialorder %v2598, 0.0
    %vm2686 = vcmp.ge.f32.partialorder %v2678, 0.0
    %vm2687 = vcmp.ge.f32.partialorder %v2680, 0.0
    %v2688 = vmul.f32 %v2596, 0.01
    %v2689 = vmul.f32 %v2598, 0.01
    %v2690 = vmul.f32 %v2678, 0.01
    %v2691 = vmul.f32 %v2680, 0.01
    %v2692 = vsel %vm2684, %v2596, %v2688
    %v2693 = vsel %vm2685, %v2598, %v2689
    %v2694 = vsel %vm2686, %v2678, %v2690
    %v2695 = vsel %vm2687, %v2680, %v2691
    %v2696 = vld [vmem:[%s6 + $0x200] sm:$0xff]
    %v2697 = vld [vmem:[%s6 + $0x208] sm:$0xff]
    %v2698 = vld [vmem:[%s6 + $0x210] sm:$0xff]
    %v2699 = vld [vmem:[%s6 + $0x218] sm:$0xff]
    %v2700 = vld [vmem:[%s6 + $0x220] sm:$0xff]
    %v2701 = vld [vmem:[%s6 + $0x228] sm:$0xff]
    %v2702 = vld [vmem:[%s6 + $0x230] sm:$0xff]
    %v2703 = vld [vmem:[%s6 + $0x238] sm:$0xff]
    %v2704 = vld [vmem:[%s6 + $0x240] sm:$0xff]
    %v2705 = vld [vmem:[%s6 + $0x248] sm:$0xff]
    %v2706 = vld [vmem:[%s6 + $0x250] sm:$0xff]
    %v2707 = vld [vmem:[%s6 + $0x258] sm:$0xff]
    %v2708 = vld [vmem:[%s6 + $0x260] sm:$0xff]
    %v2709 = vld [vmem:[%s6 + $0x268] sm:$0xff]
    %v2710 = vld [vmem:[%s6 + $0x270] sm:$0xff]
    %v2711 = vld [vmem:[%s6 + $0x278] sm:$0xff]
    %v2712 = vld [vmem:[%s6 + $0x280] sm:$0xff]
    %v2713 = vld [vmem:[%s6 + $0x288] sm:$0xff]
    %v2714 = vld [vmem:[%s6 + $0x290] sm:$0xff]
    %v2715 = vld [vmem:[%s6 + $0x298] sm:$0xff]
    %v2716 = vld [vmem:[%s6 + $0x2a0] sm:$0xff]
    %v2717 = vld [vmem:[%s6 + $0x2a8] sm:$0xff]
    %v2718 = vld [vmem:[%s6 + $0x2b0] sm:$0xff]
    %v2719 = vld [vmem:[%s6 + $0x2b8] sm:$0xff]
    %v2720 = vld [vmem:[%s6 + $0x2c0] sm:$0xff]
    %v2721 = vld [vmem:[%s6 + $0x2c8] sm:$0xff]
    %v2722 = vld [vmem:[%s6 + $0x2d0] sm:$0xff]
    %v2723 = vld [vmem:[%s6 + $0x2d8] sm:$0xff]
    %v2724 = vld [vmem:[%s6 + $0x2e0] sm:$0xff]
    %v2725 = vld [vmem:[%s6 + $0x2e8] sm:$0xff]
    %v2726 = vld [vmem:[%s6 + $0x2f0] sm:$0xff]
    %v2727 = vld [vmem:[%s6 + $0x2f8] sm:$0xff]
    %v2728 = vld [vmem:[%s6 + $0x300] sm:$0xff]
    %v2729 = vld [vmem:[%s6 + $0x308] sm:$0xff]
    %v2730 = vld [vmem:[%s6 + $0x310] sm:$0xff]
    %v2731 = vld [vmem:[%s6 + $0x318] sm:$0xff]
    %v2732 = vld [vmem:[%s6 + $0x320] sm:$0xff]
    %v2733 = vld [vmem:[%s6 + $0x328] sm:$0xff]
    %v2734 = vld [vmem:[%s6 + $0x330] sm:$0xff]
    %v2735 = vld [vmem:[%s6 + $0x338] sm:$0xff]
    %v2736 = vld [vmem:[%s6 + $0x340] sm:$0xff]
    %v2737 = vld [vmem:[%s6 + $0x348] sm:$0xff]
    %v2738 = vld [vmem:[%s6 + $0x350] sm:$0xff]
    %v2739 = vld [vmem:[%s6 + $0x358] sm:$0xff]
    %v2740 = vld [vmem:[%s6 + $0x360] sm:$0xff]
    %v2741 = vld [vmem:[%s6 + $0x368] sm:$0xff]
    %v2742 = vld [vmem:[%s6 + $0x370] sm:$0xff]
    %v2743 = vld [vmem:[%s6 + $0x378] sm:$0xff]
    %v2744 = vld [vmem:[%s6 + $0x380] sm:$0xff]
    %v2745 = vld [vmem:[%s6 + $0x388] sm:$0xff]
    %v2746 = vld [vmem:[%s6 + $0x390] sm:$0xff]
    %v2747 = vld [vmem:[%s6 + $0x398] sm:$0xff]
    %v2748 = vld [vmem:[%s6 + $0x3a0] sm:$0xff]
    %v2749 = vld [vmem:[%s6 + $0x3a8] sm:$0xff]
    %v2750 = vld [vmem:[%s6 + $0x3b0] sm:$0xff]
    %v2751 = vld [vmem:[%s6 + $0x3b8] sm:$0xff]
    %v2752 = vld [vmem:[%s6 + $0x3c0] sm:$0xff]
    %v2753 = vld [vmem:[%s6 + $0x3c8] sm:$0xff]
    %v2754 = vld [vmem:[%s6 + $0x3d0] sm:$0xff]
    %v2755 = vld [vmem:[%s6 + $0x3d8] sm:$0xff]
    %v2756 = vld [vmem:[%s6 + $0x3e0] sm:$0xff]
    %v2757 = vld [vmem:[%s6 + $0x3e8] sm:$0xff]
    %v2758 = vld [vmem:[%s6 + $0x3f0] sm:$0xff]
    %v2759 = vld [vmem:[%s6 + $0x3f8] sm:$0xff]
    %v2760 = vlaneseq
    %v2761 = vshrl.u32 %v2760, 7
    %v2762 = vsub.s32 0, %v2761
    %v2763 = vrot.slane %v47, %v2762
    %2764 = vmatprep.subr.mxu0 0.0
    %2765 = vmatpush1.msra.mxu0 %v2696
    %2766 = vmatprep.subr.mxu0 0.0
    %2767 = vmatpush1.msra.mxu0 %v2697
    %2768 = vmatprep.subr.mxu0 0.0
    %2769 = vmatpush1.msra.mxu0 %v2698
    %2770 = vmatprep.subr.mxu0 0.0
    %2771 = vmatpush1.msra.mxu0 %v2699
    %2772 = vmatprep.subr.mxu0 0.0
    %2773 = vmatpush1.msra.mxu0 %v2700
    %2774 = vmatprep.subr.mxu0 0.0
    %2775 = vmatpush1.msra.mxu0 %v2701
    %2776 = vmatprep.subr.mxu0 0.0
    %2777 = vmatpush1.msra.mxu0 %v2702
    %2778 = vmatprep.subr.mxu0 0.0
    %2779 = vmatpush1.msra.mxu0 %v2703
    %2780 = vmatprep.subr.mxu0 0.0
    %2781 = vmatpush1.msra.mxu0 %v2704
    %2782 = vmatprep.subr.mxu0 0.0
    %2783 = vmatpush1.msra.mxu0 %v2705
    %2784 = vmatprep.subr.mxu0 0.0
    %2785 = vmatpush1.msra.mxu0 %v2706
    %2786 = vmatprep.subr.mxu0 0.0
    %2787 = vmatpush1.msra.mxu0 %v2707
    %2788 = vmatprep.subr.mxu0 0.0
    %2789 = vmatpush1.msra.mxu0 %v2708
    %2790 = vmatprep.subr.mxu0 0.0
    %2791 = vmatpush1.msra.mxu0 %v2709
    %2792 = vmatprep.subr.mxu0 0.0
    %2793 = vmatpush1.msra.mxu0 %v2710
    %2794 = vmatprep.subr.mxu0 0.0
    %2795 = vmatpush1.msra.mxu0 %v2711
    %2796 = vmatprep.subr.mxu0 0.0
    %2797 = vmatpush1.msra.mxu0 %v2712
    %2798 = vmatprep.subr.mxu0 0.0
    %2799 = vmatpush1.msra.mxu0 %v2713
    %2800 = vmatprep.subr.mxu0 0.0
    %2801 = vmatpush1.msra.mxu0 %v2714
    %2802 = vmatprep.subr.mxu0 0.0
    %2803 = vmatpush1.msra.mxu0 %v2715
    %2804 = vmatprep.subr.mxu0 0.0
    %2805 = vmatpush1.msra.mxu0 %v2716
    %2806 = vmatprep.subr.mxu0 0.0
    %2807 = vmatpush1.msra.mxu0 %v2717
    %2808 = vmatprep.subr.mxu0 0.0
    %2809 = vmatpush1.msra.mxu0 %v2718
    %2810 = vmatprep.subr.mxu0 0.0
    %2811 = vmatpush1.msra.mxu0 %v2719
    %2812 = vmatprep.subr.mxu0 0.0
    %2813 = vmatpush1.msra.mxu0 %v2720
    %2814 = vmatprep.subr.mxu0 0.0
    %2815 = vmatpush1.msra.mxu0 %v2721
    %2816 = vmatprep.subr.mxu0 0.0
    %2817 = vmatpush1.msra.mxu0 %v2722
    %2818 = vmatprep.subr.mxu0 0.0
    %2819 = vmatpush1.msra.mxu0 %v2723
    %2820 = vmatprep.subr.mxu0 0.0
    %2821 = vmatpush1.msra.mxu0 %v2724
    %2822 = vmatprep.subr.mxu0 0.0
    %2823 = vmatpush1.msra.mxu0 %v2725
    %2824 = vmatprep.subr.mxu0 0.0
    %2825 = vmatpush1.msra.mxu0 %v2726
    %2826 = vmatprep.subr.mxu0 0.0
    %2827 = vmatpush1.msra.mxu0 %v2727
    %2828 = vmatprep.mubr.f32.mxu0 %v2693
    %2829 = vmatmul.mubr.f32.gmra.mrb[0].mxu0 %v2692
    %v2830 = vpop.f32.mrb[0].mxu0
    %v2831 = vadd.f32 %v2763, %v2830
    %v2832 = vpop.f32.mrb[0].mxu0
    %2833 = vdwg.mxu0
    %2834 = vmatprep.subr.mxu0 0.0
    %2835 = vmatpush1.msra.mxu0 %v2728
    %2836 = vmatprep.subr.mxu0 0.0
    %2837 = vmatpush1.msra.mxu0 %v2729
    %2838 = vmatprep.subr.mxu0 0.0
    %2839 = vmatpush1.msra.mxu0 %v2730
    %2840 = vmatprep.subr.mxu0 0.0
    %2841 = vmatpush1.msra.mxu0 %v2731
    %2842 = vmatprep.subr.mxu0 0.0
    %2843 = vmatpush1.msra.mxu0 %v2732
    %2844 = vmatprep.subr.mxu0 0.0
    %2845 = vmatpush1.msra.mxu0 %v2733
    %2846 = vmatprep.subr.mxu0 0.0
    %2847 = vmatpush1.msra.mxu0 %v2734
    %2848 = vmatprep.subr.mxu0 0.0
    %2849 = vmatpush1.msra.mxu0 %v2735
    %2850 = vmatprep.subr.mxu0 0.0
    %2851 = vmatpush1.msra.mxu0 %v2736
    %2852 = vmatprep.subr.mxu0 0.0
    %2853 = vmatpush1.msra.mxu0 %v2737
    %2854 = vmatprep.subr.mxu0 0.0
    %2855 = vmatpush1.msra.mxu0 %v2738
    %2856 = vmatprep.subr.mxu0 0.0
    %2857 = vmatpush1.msra.mxu0 %v2739
    %2858 = vmatprep.subr.mxu0 0.0
    %2859 = vmatpush1.msra.mxu0 %v2740
    %2860 = vmatprep.subr.mxu0 0.0
    %2861 = vmatpush1.msra.mxu0 %v2741
    %2862 = vmatprep.subr.mxu0 0.0
    %2863 = vmatpush1.msra.mxu0 %v2742
    %2864 = vmatprep.subr.mxu0 0.0
    %2865 = vmatpush1.msra.mxu0 %v2743
    %2866 = vmatprep.subr.mxu0 0.0
    %2867 = vmatpush1.msra.mxu0 %v2744
    %2868 = vmatprep.subr.mxu0 0.0
    %2869 = vmatpush1.msra.mxu0 %v2745
    %2870 = vmatprep.subr.mxu0 0.0
    %2871 = vmatpush1.msra.mxu0 %v2746
    %2872 = vmatprep.subr.mxu0 0.0
    %2873 = vmatpush1.msra.mxu0 %v2747
    %2874 = vmatprep.subr.mxu0 0.0
    %2875 = vmatpush1.msra.mxu0 %v2748
    %2876 = vmatprep.subr.mxu0 0.0
    %2877 = vmatpush1.msra.mxu0 %v2749
    %2878 = vmatprep.subr.mxu0 0.0
    %2879 = vmatpush1.msra.mxu0 %v2750
    %2880 = vmatprep.subr.mxu0 0.0
    %2881 = vmatpush1.msra.mxu0 %v2751
    %2882 = vmatprep.subr.mxu0 0.0
    %2883 = vmatpush1.msra.mxu0 %v2752
    %2884 = vmatprep.subr.mxu0 0.0
    %2885 = vmatpush1.msra.mxu0 %v2753
    %2886 = vmatprep.subr.mxu0 0.0
    %2887 = vmatpush1.msra.mxu0 %v2754
    %2888 = vmatprep.subr.mxu0 0.0
    %2889 = vmatpush1.msra.mxu0 %v2755
    %2890 = vmatprep.subr.mxu0 0.0
    %2891 = vmatpush1.msra.mxu0 %v2756
    %2892 = vmatprep.subr.mxu0 0.0
    %2893 = vmatpush1.msra.mxu0 %v2757
    %2894 = vmatprep.subr.mxu0 0.0
    %2895 = vmatpush1.msra.mxu0 %v2758
    %2896 = vmatprep.subr.mxu0 0.0
    %2897 = vmatpush1.msra.mxu0 %v2759
    %2898 = vmatprep.mubr.f32.mxu0 %v2695
    %2899 = vmatmul.mubr.f32.gmra.mrb[0].mxu0 %v2694
    %v2900 = vpop.f32.mrb[0].mxu0
    %v2901 = vadd.f32 %v2831, %v2900
    %v2902 = vpop.f32.mrb[0].mxu0
    %2903 = vdwg.mxu0
    %vm2904 = vcmp.ge.f32.partialorder %v2901, 0.0
    %v2905 = vmul.f32 %v2901, 0.01
    %v2906 = vsel %vm2904, %v2901, %v2905
    %v2907 = vadd.f32 %v1531, %v2906
    %vm2908 = vcmask 89088
    %2909 = vst.msk [vmem:[#allocation2] sm:$0xff] %vm2908, %v2907
    %v2910 = vlaneseq
    %v2911 = vshrl.u32 %v2910, 7
    %v2912 = vsub.s32 0, %v2911
    %v2913 = vrot.slane %v48, %v2912
    %v2914 = vmul.f32 %v2907, %v2913
    %v2915 = vsel %vm2908, %v2914, 0.0
    %2916 = vadd.xlane.f32.xlu0 %v2915
    %v2917 = vpop.xlane.xlu0 %2916
    %v2918 = vlaneseq
    %v2919 = vshrl.u32 %v2918, 7
    %v2920 = vsub.s32 0, %v2919
    %v2921 = vrot.slane %v49, %v2920
    %v2922 = vadd.f32 %v2917, %v2921
    %v2923 = vmul.f32 %v2922, 0.5
    %v2924 = vtanh.pop %v2923
    %v2925 = vadd.f32 %v2924, 1.0
    %v2926 = vmul.f32 %v2925, 0.5
    %vm2927 = vcmask 7168
    %2928 = vst.msk [vmem:[%s10] sm:$0xff] %vm2927, %v2926
    // Predicated region
    $region38: #{clinnet_forward.1} parent=1 // pred_check
      _
    $region39: #{clinnet_forward.1} parent=1 // pred_check_branch
      %2930 = sbr.rel (0) target = $region41
    $region40: #{clinnet_forward.1} parent=1 // pred_region
      %s2932 = ssub.s32 128, 128
      %2933 = vsyncadd [#allocation3], %s2932
      %s2935 = sshll.u32 [#allocation2], 4
      %s2936 = int_to_ptr.vmem [resolvable:$true] %s2935
      %2938 = dma.vmem_to_hbm [thread:$0]  %s2936, 128, %s9, [#allocation3]
    $region41: #{clinnet_forward.1} parent=1 // pred_fallthru
      _
    // Predicated region
    $region42: #{clinnet_forward.1} parent=1 // pred_check
      _
    $region43: #{clinnet_forward.1} parent=1 // pred_check_branch
      %2940 = sbr.rel (0) target = $region45
    $region44: #{clinnet_forward.1} parent=1 // pred_region
      _
    $region45: #{clinnet_forward.1} parent=1 // pred_fallthru
      _
    // Predicated region
    $region46: #{clinnet_forward.1} parent=1 // pred_check
      _
    $region47: #{clinnet_forward.1} parent=1 // pred_check_branch
      %2942 = sbr.rel (0) target = $region49
    $region48: #{clinnet_forward.1} parent=1 // pred_region
      %2943 = dma.done [#allocation3], 128
    $region49: #{clinnet_forward.1} parent=1 // pred_fallthru
      _
    // Predicated region
    $region50: #{clinnet_forward.1} parent=1 // pred_check
      _
    $region51: #{clinnet_forward.1} parent=1 // pred_check_branch
      %2945 = sbr.rel (0) target = $region53
    $region52: #{clinnet_forward.1} parent=1 // pred_region
      _
    $region53: #{clinnet_forward.1} parent=1 // pred_fallthru
      _
    %2946 = vsyncpa [#allocation3], 1

</llo_original>
